<compile_context>
chip_gen: v5e
topology: v5e:2x2
jax: 0.10.0
libtpu: 0.0.40
codegen_flags: <defaults>
</compile_context>

<pallas_src>
import jax
import jax.numpy as jnp
from jax.experimental import pallas as pl
from jax.experimental.pallas import tpu as pltpu


def _round_up(v, m):
    return ((v + m - 1) // m) * m


def _make_multidae_kernel(n_resident_layers, compute_dtype):
    """n_resident_layers = n_enc + n_dec - 1 (all tanh layers, weights VMEM-resident)."""

    def kernel(*refs):
        x_ref = refs[0]
        resident = refs[1:1 + 2 * n_resident_layers]
        w_last_ref = refs[1 + 2 * n_resident_layers]
        b_last_ref = refs[2 + 2 * n_resident_layers]
        out_ref = refs[3 + 2 * n_resident_layers]
        h_ref = refs[4 + 2 * n_resident_layers]       # VMEM scratch [TM, d_hidden] f32

        j = pl.program_id(1)

        # Compute the (small) encoder + intermediate-decoder stack once per batch
        # tile; the result is reused for every output-column tile j.
        @pl.when(j == 0)
        def _():
            h = x_ref[...].astype(jnp.float32)
            # F.normalize: x / clamp_min(||x||_2, 1e-12) along the feature axis.
            sq = jnp.sum(h * h, axis=-1, keepdims=True)
            inv_norm = pl.reciprocal(jnp.maximum(jnp.sqrt(sq), 1e-12), approx=False)
            h = h * inv_norm
            # TODO(synk): training-mode dropout not implemented (eval mode).
            for layer in range(n_resident_layers):
                w = resident[2 * layer][...]          # [d_in, d_out], compute dtype
                b = resident[2 * layer + 1][...]      # [1, d_out], f32
                acc = jnp.dot(h.astype(compute_dtype), w,
                              preferred_element_type=jnp.float32)
                h = jnp.tanh(acc + b)
            h_ref[...] = h

        # Last decoder layer (no tanh): streamed TN-wide column tile of W_last.
        acc = jnp.dot(h_ref[...].astype(compute_dtype), w_last_ref[...],
                      preferred_element_type=jnp.float32)
        out_ref[...] = (acc + b_last_ref[...]).astype(out_ref.dtype)

    return kernel


def multidae_forward(x, enc_params, dec_params, *, tm=128, tn=256,
                     compute_dtype=jnp.bfloat16):
    """MultiDAE forward pass in one Pallas kernel.

    enc_params / dec_params: lists of (W, b) with W pre-transposed to
    [d_in, d_out] and b shaped [1, d_out] (f32).
    """
    assert len(enc_params) >= 1 and len(dec_params) >= 1
    batch, d_in = x.shape
    w_last, b_last = dec_params[-1]
    d_hidden, n_out = w_last.shape

    resident = list(enc_params) + list(dec_params[:-1])
    n_resident_layers = len(resident)

    # Lane/sublane-friendly tiles; clamp + pad so small shapes still work.
    tm_eff = min(tm, _round_up(batch, 8))
    tn_eff = min(tn, _round_up(n_out, 128))
    pb = _round_up(batch, tm_eff)
    pn = _round_up(n_out, tn_eff)

    x_p = x if pb == batch else jnp.pad(x, ((0, pb - batch), (0, 0)))
    w_last_p = w_last if pn == n_out else jnp.pad(w_last, ((0, 0), (0, pn - n_out)))
    b_last_p = b_last if pn == n_out else jnp.pad(b_last, ((0, 0), (0, pn - n_out)))

    # Weights feed the MXU in compute dtype (bf16 halves HBM bytes for the
    # streamed last-layer weight); biases stay f32 for the f32 bias-add/tanh.
    cdt = jnp.dtype(compute_dtype)
    flat_resident = []
    for w, b in resident:
        flat_resident.append(w.astype(cdt))
        flat_resident.append(b.astype(jnp.float32))
    w_last_p = w_last_p.astype(cdt)
    b_last_p = b_last_p.astype(jnp.float32)

    grid = (pb // tm_eff, pn // tn_eff)

    in_specs = [pl.BlockSpec((tm_eff, d_in), lambda i, j: (i, 0))]     # x: per-batch tile
    for arr in flat_resident:                                          # VMEM-resident params
        in_specs.append(pl.BlockSpec(arr.shape, lambda i, j: (0, 0)))
    # Streamed column tiles of the big final decoder weight (+ bias).
    # Default pipelining (= pl.Buffered(2)) double-buffers these tiles.
    in_specs.append(pl.BlockSpec((d_hidden, tn_eff), lambda i, j: (0, j)))
    in_specs.append(pl.BlockSpec((1, tn_eff), lambda i, j: (0, j)))

    out_specs = pl.BlockSpec((tm_eff, tn_eff), lambda i, j: (i, j))    # lane-dense output
    out_shape = jax.ShapeDtypeStruct((pb, pn), jnp.float32)

    scratch_shapes = [pltpu.VMEM((tm_eff, d_hidden), jnp.float32)]

    # VMEM budget (explicit, so the plan also fits v7x's 64 MiB VMEM).
    resident_bytes = sum(int(a.size) * a.dtype.itemsize for a in flat_resident)
    streamed_tile_bytes = (
        tm_eff * d_in * x_p.dtype.itemsize            # x tile
        + d_hidden * tn_eff * cdt.itemsize            # W_last tile
        + tn_eff * 4                                  # b_last tile
        + tm_eff * tn_eff * 4                         # out tile
    )
    scratch_bytes = tm_eff * d_hidden * 4
    footprint = 2 * resident_bytes + 2 * streamed_tile_bytes + scratch_bytes
    vmem_limit = int(min(max(2 * footprint, 16 * 1024 * 1024), 64 * 1024 * 1024))

    # Advisory cost estimate for the XLA scheduler.
    layer_shapes = [w.shape for w, _ in (list(enc_params) + list(dec_params))]
    flops = 2 * pb * sum(di * do for di, do in layer_shapes)
    transcendentals = pb * (sum(do for _, do in layer_shapes[:-1]) + 1)
    bytes_accessed = (
        int(x_p.size) * x_p.dtype.itemsize
        + resident_bytes
        + int(w_last_p.size) * w_last_p.dtype.itemsize
        + int(b_last_p.size) * 4
        + pb * pn * 4
    )
    cost = pl.CostEstimate(flops=flops, transcendentals=transcendentals,
                           bytes_accessed=bytes_accessed)

    kernel = _make_multidae_kernel(n_resident_layers, cdt)

    out_padded = pl.pallas_call(
        kernel,
        out_shape=out_shape,
        grid=grid,
        in_specs=in_specs,
        out_specs=out_specs,
        scratch_shapes=scratch_shapes,
        compiler_params=pltpu.CompilerParams(
            dimension_semantics=("parallel", "arbitrary"),
            vmem_limit_bytes=vmem_limit),
        cost_estimate=cost,
    )(x_p, *flat_resident, w_last_p, b_last_p)

    return out_padded[:batch, :n_out]


def init_linear_params(key, dims):
    """Deterministic xavier_normal_ weights + normal_ biases, matching init_weight()."""
    params = []
    for d_in, d_out in zip(dims[:-1], dims[1:]):
        key, kw, kb = jax.random.split(key, 3)
        std = (2.0 / (d_in + d_out)) ** 0.5   # xavier normal, gain=1
        # PyTorch weight is [d_out, d_in]; store pre-transposed as [d_in, d_out].
        w = jax.random.normal(kw, (d_in, d_out), dtype=jnp.float32) * std
        b = jax.random.normal(kb, (1, d_out), dtype=jnp.float32)
        params.append((w, b))
    return key, params


def multidae_reference(x, enc_params, dec_params):
    """Pure-JAX reference of the same forward pass (for correctness checks)."""
    norm = jnp.sqrt(jnp.sum(x * x, axis=-1, keepdims=True))
    h = x / jnp.maximum(norm, 1e-12)
    for w, b in enc_params:
        h = jnp.tanh(h @ w + b)
    n_dec = len(dec_params)
    for i, (w, b) in enumerate(dec_params):
        h = h @ w + b
        if i != n_dec - 1:
            h = jnp.tanh(h)
    return h


if __name__ == "__main__":
    # Small but MXU/lane-friendly shapes consistent with MultiDAE:
    #   dec_dims = [128, 256, 512]  ->  enc_dims = [512, 256, 128]
    #   x: [batch=256, n_items=512]   -> grid = (2 batch tiles, 2 item tiles)
    dec_dims = [128, 256, 512]
    enc_dims = dec_dims[::-1]
    batch = 256

    key = jax.random.PRNGKey(0)
    key, enc_params = init_linear_params(key, enc_dims)
    key, dec_params = init_linear_params(key, dec_dims)
    key, kx = jax.random.split(key)
    x = jax.random.uniform(kx, (batch, enc_dims[0]), dtype=jnp.float32)

    ref = multidae_reference(x, enc_params, dec_params)

    # Full-f32 MXU path: tight check against the pure-JAX reference.
    out_f32 = jax.block_until_ready(
        multidae_forward(x, enc_params, dec_params, compute_dtype=jnp.float32))
    assert out_f32.shape == (batch, dec_dims[-1])
    assert jnp.allclose(out_f32, ref, atol=1e-4, rtol=1e-4), "f32 mismatch vs reference"

    # bf16-matmul path (f32 accumulation) -- the perf default; looser tolerance.
    out_bf16 = jax.block_until_ready(
        multidae_forward(x, enc_params, dec_params, compute_dtype=jnp.bfloat16))
    assert out_bf16.shape == (batch, dec_dims[-1])
    assert jnp.allclose(out_bf16, ref, atol=5e-2, rtol=5e-2), "bf16 mismatch vs reference"

    print("KERNEL_OK")
</pallas_src>

<mosaic_0001>
module attributes {stable_mosaic.version = 11 : i64} {
  func.func @kernel(%arg0: i32, %arg1: i32, %arg2: memref<128x512xf32, #tpu.memory_space<vmem>>, %arg3: memref<512x256xf32, #tpu.memory_space<vmem>>, %arg4: memref<1x256xf32, #tpu.memory_space<vmem>>, %arg5: memref<256x128xf32, #tpu.memory_space<vmem>>, %arg6: memref<1x128xf32, #tpu.memory_space<vmem>>, %arg7: memref<128x256xf32, #tpu.memory_space<vmem>>, %arg8: memref<1x256xf32, #tpu.memory_space<vmem>>, %arg9: memref<256x256xf32, #tpu.memory_space<vmem>>, %arg10: memref<1x256xf32, #tpu.memory_space<vmem>>, %arg11: memref<128x256xf32, #tpu.memory_space<vmem>>, %arg12: memref<128x256xf32, #tpu.memory_space<vmem>>) attributes {dimension_semantics = [#tpu.dimension_semantics<parallel>, #tpu.dimension_semantics<arbitrary>], iteration_bounds = array<i64: 2, 2>, scalar_prefetch = 0 : i64, scratch_operands = 1 : i64, tpu.core_type = #tpu.core_type<tc>, window_params = [{transform_indices = @transform_0, window_bounds = array<i64: 128, 512>}, {pipeline_mode = #tpu.pipeline_mode<synchronous>, transform_indices = @transform_1, window_bounds = array<i64: 512, 256>}, {pipeline_mode = #tpu.pipeline_mode<synchronous>, transform_indices = @transform_2, window_bounds = array<i64: 1, 256>}, {pipeline_mode = #tpu.pipeline_mode<synchronous>, transform_indices = @transform_3, window_bounds = array<i64: 256, 128>}, {pipeline_mode = #tpu.pipeline_mode<synchronous>, transform_indices = @transform_4, window_bounds = array<i64: 1, 128>}, {pipeline_mode = #tpu.pipeline_mode<synchronous>, transform_indices = @transform_5, window_bounds = array<i64: 128, 256>}, {pipeline_mode = #tpu.pipeline_mode<synchronous>, transform_indices = @transform_6, window_bounds = array<i64: 1, 256>}, {transform_indices = @transform_7, window_bounds = array<i64: 256, 256>}, {transform_indices = @transform_8, window_bounds = array<i64: 1, 256>}, {transform_indices = @transform_9, window_bounds = array<i64: 128, 256>}]} {
    %c0_i32 = arith.constant 0 : i32
    %0 = arith.cmpi eq, %arg1, %c0_i32 : i32
    %1 = arith.extui %0 : i1 to i32
    %c0_i32_0 = arith.constant 0 : i32
    %2 = arith.cmpi ne, %1, %c0_i32_0 : i32
    scf.if %2 {
      %c0_8 = arith.constant 0 : index
      %c0_9 = arith.constant 0 : index
      %10 = vector.load %arg2[%c0_8, %c0_9] : memref<128x512xf32, #tpu.memory_space<vmem>>, vector<128x512xf32>
      %11 = arith.mulf %10, %10 : vector<128x512xf32>
      %cst_10 = arith.constant dense<0.000000e+00> : vector<128xf32>
      %12 = vector.multi_reduction <add>, %11, %cst_10 [1] : vector<128x512xf32> to vector<128xf32>
      %13 = vector.shape_cast %12 : vector<128xf32> to vector<128x1xf32>
      %14 = math.sqrt %13 : vector<128x1xf32>
      %cst_11 = arith.constant 9.99999996E-13 : f32
      %15 = vector.broadcast %cst_11 : f32 to vector<128x1xf32>
      %16 = arith.maximumf %14, %15 : vector<128x1xf32>
      %17 = tpu.reciprocal %16 : vector<128x1xf32> -> vector<128x1xf32>
      %18 = vector.broadcast %17 : vector<128x1xf32> to vector<128x512xf32>
      %19 = arith.mulf %10, %18 : vector<128x512xf32>
      %c0_12 = arith.constant 0 : index
      %c0_13 = arith.constant 0 : index
      %20 = vector.load %arg3[%c0_12, %c0_13] : memref<512x256xf32, #tpu.memory_space<vmem>>, vector<512x256xf32>
      %c0_14 = arith.constant 0 : index
      %c0_15 = arith.constant 0 : index
      %21 = vector.load %arg4[%c0_14, %c0_15] : memref<1x256xf32, #tpu.memory_space<vmem>>, vector<1x256xf32>
      %cst_16 = arith.constant dense<0.000000e+00> : vector<128x256xf32>
      %22 = tpu.matmul %19, %20, %cst_16 {dimension_numbers = #tpu.dot_dimension_numbers<[1], [0], [0], [1], [0, 0, 1, 1], [], []>} : vector<128x512xf32>, vector<512x256xf32>, vector<128x256xf32> -> vector<128x256xf32>
      %23 = vector.broadcast %21 : vector<1x256xf32> to vector<128x256xf32>
      %24 = arith.addf %22, %23 : vector<128x256xf32>
      %25 = math.tanh %24 : vector<128x256xf32>
      %c0_17 = arith.constant 0 : index
      %c0_18 = arith.constant 0 : index
      %26 = vector.load %arg5[%c0_17, %c0_18] : memref<256x128xf32, #tpu.memory_space<vmem>>, vector<256x128xf32>
      %c0_19 = arith.constant 0 : index
      %c0_20 = arith.constant 0 : index
      %27 = vector.load %arg6[%c0_19, %c0_20] : memref<1x128xf32, #tpu.memory_space<vmem>>, vector<1x128xf32>
      %cst_21 = arith.constant dense<0.000000e+00> : vector<128x128xf32>
      %28 = tpu.matmul %25, %26, %cst_21 {dimension_numbers = #tpu.dot_dimension_numbers<[1], [0], [0], [1], [0, 0, 1, 1], [], []>} : vector<128x256xf32>, vector<256x128xf32>, vector<128x128xf32> -> vector<128x128xf32>
      %29 = vector.broadcast %27 : vector<1x128xf32> to vector<128x128xf32>
      %30 = arith.addf %28, %29 : vector<128x128xf32>
      %31 = math.tanh %30 : vector<128x128xf32>
      %c0_22 = arith.constant 0 : index
      %c0_23 = arith.constant 0 : index
      %32 = vector.load %arg7[%c0_22, %c0_23] : memref<128x256xf32, #tpu.memory_space<vmem>>, vector<128x256xf32>
      %c0_24 = arith.constant 0 : index
      %c0_25 = arith.constant 0 : index
      %33 = vector.load %arg8[%c0_24, %c0_25] : memref<1x256xf32, #tpu.memory_space<vmem>>, vector<1x256xf32>
      %cst_26 = arith.constant dense<0.000000e+00> : vector<128x256xf32>
      %34 = tpu.matmul %31, %32, %cst_26 {dimension_numbers = #tpu.dot_dimension_numbers<[1], [0], [0], [1], [0, 0, 1, 1], [], []>} : vector<128x128xf32>, vector<128x256xf32>, vector<128x256xf32> -> vector<128x256xf32>
      %35 = vector.broadcast %33 : vector<1x256xf32> to vector<128x256xf32>
      %36 = arith.addf %34, %35 : vector<128x256xf32>
      %37 = math.tanh %36 : vector<128x256xf32>
      %c0_27 = arith.constant 0 : index
      %c0_28 = arith.constant 0 : index
      %38 = vector.load %arg12[%c0_27, %c0_28] : memref<128x256xf32, #tpu.memory_space<vmem>>, vector<128x256xf32>
      tpu.vector_store %arg12[%c0_27, %c0_28], %37 {strides = array<i32>} : memref<128x256xf32, #tpu.memory_space<vmem>>, vector<128x256xf32>,
    } else {
    }
    %c0 = arith.constant 0 : index
    %c0_1 = arith.constant 0 : index
    %3 = vector.load %arg12[%c0, %c0_1] : memref<128x256xf32, #tpu.memory_space<vmem>>, vector<128x256xf32>
    %c0_2 = arith.constant 0 : index
    %c0_3 = arith.constant 0 : index
    %4 = vector.load %arg9[%c0_2, %c0_3] : memref<256x256xf32, #tpu.memory_space<vmem>>, vector<256x256xf32>
    %cst = arith.constant dense<0.000000e+00> : vector<128x256xf32>
    %5 = tpu.matmul %3, %4, %cst {dimension_numbers = #tpu.dot_dimension_numbers<[1], [0], [0], [1], [0, 0, 1, 1], [], []>} : vector<128x256xf32>, vector<256x256xf32>, vector<128x256xf32> -> vector<128x256xf32>
    %c0_4 = arith.constant 0 : index
    %c0_5 = arith.constant 0 : index
    %6 = vector.load %arg10[%c0_4, %c0_5] : memref<1x256xf32, #tpu.memory_space<vmem>>, vector<1x256xf32>
    %7 = vector.broadcast %6 : vector<1x256xf32> to vector<128x256xf32>
    %8 = arith.addf %5, %7 : vector<128x256xf32>
    %c0_6 = arith.constant 0 : index
    %c0_7 = arith.constant 0 : index
    %9 = vector.load %arg11[%c0_6, %c0_7] : memref<128x256xf32, #tpu.memory_space<vmem>>, vector<128x256xf32>
    tpu.vector_store %arg11[%c0_6, %c0_7], %8 {strides = array<i32>} : memref<128x256xf32, #tpu.memory_space<vmem>>, vector<128x256xf32>,
    return
  }
  func.func @transform_0(%arg0: i32, %arg1: i32) -> (i32, i32) {
    %c0_i32 = arith.constant 0 : i32
    %c0_i32_0 = arith.constant 0 : i32
    return %arg0, %c0_i32 : i32, i32
  }
  func.func @transform_1(%arg0: i32, %arg1: i32) -> (i32, i32) {
    %c0_i32 = arith.constant 0 : i32
    %c0_i32_0 = arith.constant 0 : i32
    %c0_i32_1 = arith.constant 0 : i32
    return %c0_i32, %c0_i32_0 : i32, i32
  }
  func.func @transform_2(%arg0: i32, %arg1: i32) -> (i32, i32) {
    %c0_i32 = arith.constant 0 : i32
    %c0_i32_0 = arith.constant 0 : i32
    %c0_i32_1 = arith.constant 0 : i32
    return %c0_i32, %c0_i32_0 : i32, i32
  }
  func.func @transform_3(%arg0: i32, %arg1: i32) -> (i32, i32) {
    %c0_i32 = arith.constant 0 : i32
    %c0_i32_0 = arith.constant 0 : i32
    %c0_i32_1 = arith.constant 0 : i32
    return %c0_i32, %c0_i32_0 : i32, i32
  }
  func.func @transform_4(%arg0: i32, %arg1: i32) -> (i32, i32) {
    %c0_i32 = arith.constant 0 : i32
    %c0_i32_0 = arith.constant 0 : i32
    %c0_i32_1 = arith.constant 0 : i32
    return %c0_i32, %c0_i32_0 : i32, i32
  }
  func.func @transform_5(%arg0: i32, %arg1: i32) -> (i32, i32) {
    %c0_i32 = arith.constant 0 : i32
    %c0_i32_0 = arith.constant 0 : i32
    %c0_i32_1 = arith.constant 0 : i32
    return %c0_i32, %c0_i32_0 : i32, i32
  }
  func.func @transform_6(%arg0: i32, %arg1: i32) -> (i32, i32) {
    %c0_i32 = arith.constant 0 : i32
    %c0_i32_0 = arith.constant 0 : i32
    %c0_i32_1 = arith.constant 0 : i32
    return %c0_i32, %c0_i32_0 : i32, i32
  }
  func.func @transform_7(%arg0: i32, %arg1: i32) -> (i32, i32) {
    %c0_i32 = arith.constant 0 : i32
    %c0_i32_0 = arith.constant 0 : i32
    return %c0_i32, %arg1 : i32, i32
  }
  func.func @transform_8(%arg0: i32, %arg1: i32) -> (i32, i32) {
    %c0_i32 = arith.constant 0 : i32
    %c0_i32_0 = arith.constant 0 : i32
    return %c0_i32, %arg1 : i32, i32
  }
  func.func @transform_9(%arg0: i32, %arg1: i32) -> (i32, i32) {
    %c0_i32 = arith.constant 0 : i32
    return %arg0, %arg1 : i32, i32
  }
}

</mosaic_0001>

<llo_original>
// kernel: tpu_custom_call.1
$region0: #{tpu_custom_call.1}
  #allocation0 [shape = 'u32[]', space=smem, size = 0x4, offset = 0x4, fixed_abs, tag = 'smem constant byte address 0x4 - core index']
  #allocation1 [shape = 'u32[72,128]{1,0:T(1,128)}', space=vmem, size = 0x9000, scoped, tag = 'internal scratch']
  #allocation2 [shape = 'f32[128,256]{1,0:T(8,128)}', space=vmem, size = 0x20000, scoped, tag = 'scratch operand']
  %s0 = inlined_call_operand.hbm [shape: f32[256,512], index: 0, kind: input, shape index: {}]
  %s1 = inlined_call_operand.hbm [shape: f32[512,256], index: 1, kind: input, shape index: {}]
  %s2 = inlined_call_operand.hbm [shape: f32[1,256], index: 2, kind: input, shape index: {}]
  %s3 = inlined_call_operand.hbm [shape: f32[256,128], index: 3, kind: input, shape index: {}]
  %s4 = inlined_call_operand.vmem [shape: f32[1,128], index: 4, kind: input, shape index: {}]
  %s5 = inlined_call_operand.hbm [shape: f32[128,256], index: 5, kind: input, shape index: {}]
  %s6 = inlined_call_operand.vmem [shape: f32[1,256], index: 6, kind: input, shape index: {}]
  %s7 = inlined_call_operand.hbm [shape: f32[256,512], index: 7, kind: input, shape index: {}]
  %s8 = inlined_call_operand.vmem [shape: f32[1,512], index: 8, kind: input, shape index: {}]
  %s9 = inlined_call_operand.hbm [shape: f32[256,512], index: 9, kind: output, shape index: {}]
  %s10 = sld [smem:[#allocation0]]
  $region97: #{tpu_custom_call.1} parent=0
    _
  %s12 = ssub.s32 1, %s10
  %s13 = scalar_select 0, %s12, %s10
  $region1: #{tpu_custom_call.1} parent=0
    #allocation3 [shape = 'u8[524288]{0}', space=vmem, size = 0x80000, scoped, tag = 'input window, operand 0']
    #allocation4 [shape = 's32[2]{0}', space=sflag, size = 0x8, scoped, tag = 'scoped memory for tpu_custom_call.1']
    #allocation5 [shape = 's32[2]{0}', space=sflag, size = 0x8, scoped, tag = 'scoped memory for tpu_custom_call.1']
    #allocation6 [shape = 'u8[524288]{0}', space=vmem, size = 0x80000, scoped, tag = 'input window, operand 1, single buffered']
    #allocation7 [shape = 's32[1]{0}', space=sflag, size = 0x4, scoped, tag = 'scoped memory for tpu_custom_call.1']
    #allocation8 [shape = 'u8[1024]{0}', space=vmem, size = 0x400, scoped, tag = 'input window, operand 2, single buffered']
    #allocation9 [shape = 'u8[131072]{0}', space=vmem, size = 0x20000, scoped, tag = 'input window, operand 3, single buffered']
    #allocation10 [shape = 's32[1]{0}', space=sflag, size = 0x4, scoped, tag = 'scoped memory for tpu_custom_call.1']
    #allocation11 [shape = 'u8[131072]{0}', space=vmem, size = 0x20000, scoped, tag = 'input window, operand 5, single buffered']
    #allocation12 [shape = 'u8[524288]{0}', space=vmem, size = 0x80000, scoped, tag = 'input window, operand 7']
    #allocation13 [shape = 's32[2]{0}', space=sflag, size = 0x8, scoped, tag = 'scoped memory for tpu_custom_call.1']
    #allocation14 [shape = 'u8[262144]{0}', space=vmem, size = 0x40000, scoped, tag = 'output window, operand 0']
    %14 = vsyncpa [#allocation4], 0
    %s15 = scalar_lea.sflag [#allocation4], 1
    %16 = vsyncpa %s15, 0
    %17 = vsyncpa [#allocation7], 0
    %18 = vsyncpa [#allocation10], 0
    %19 = vsyncpa [#allocation13], 0
    %s20 = scalar_lea.sflag [#allocation13], 1
    %21 = vsyncpa %s20, 0
    %22 = vsyncpa [#allocation5], 0
    %s23 = scalar_lea.sflag [#allocation5], 1
    %24 = vsyncpa %s23, 0
    loop: start=0, step=1, limit=6
    $region2: #{tpu_custom_call.1} parent=1 // loop_pre_header
      _
    $region3: #{tpu_custom_call.1} parent=1 // loop_header
      %s26 = sphi 0, %s30
      %p27 = scmp.ge.s32.totalorder %s26, 6
      %s33 = sphi 0, %s45
      %s34 = sphi 0, %s41
      %s35 = sphi 0, %s33
      %s36 = sphi 0, %s34
      %s37 = sphi 0, %s35
      %s38 = sphi 0, %s36
      %s48 = sphi 0, %s50
      %s51 = sphi 0, %s48
      %s52 = sphi 0, %s51
      %s68 = sphi 0, %s52
      %s72 = sphi 0, %s72
      %s74 = sphi 0, %s72
      %s75 = sphi 0, %s74
      %s89 = sphi 0, %s75
      %s93 = sphi 0, %s93
      %s95 = sphi 0, %s93
      %s96 = sphi 0, %s95
      %s110 = sphi 0, %s96
      %s114 = sphi 0, %s114
      %s116 = sphi 0, %s114
      %s117 = sphi 0, %s116
      %s131 = sphi 0, %s117
      %s135 = sphi 0, %s135
      %s137 = sphi 0, %s135
      %s138 = sphi 0, %s137
      %s152 = sphi 0, %s138
      %s156 = sphi 0, %s156
      %s158 = sphi 0, %s156
      %s159 = sphi 0, %s158
      %s173 = sphi 0, %s159
      %s177 = sphi 0, %s177
      %s179 = sphi 0, %s177
      %s180 = sphi 0, %s179
      %s194 = sphi 0, %s180
      %s200 = sphi 0, %s202
      %s203 = sphi 0, %s200
      %s204 = sphi 0, %s203
      %s220 = sphi 0, %s204
      %s226 = sphi 0, %s228
      %s229 = sphi 0, %s226
      %s230 = sphi 0, %s229
      %s246 = sphi 0, %s230
      %s254 = sphi 0, %s256
      %s257 = sphi 0, %s254
      %s258 = sphi 0, %s257
      %s274 = sphi 0, %s258
    $region4: #{tpu_custom_call.1} parent=1 // loop_header_branch
      %29 = sbr.rel (%p27) target = $region8
    $region5: #{tpu_custom_call.1} parent=1 // loop_body
      %s31 = ssub.s32 %s26, 1
      %s32 = ssub.s32 %s26, 2
      %s39 = sadd.s32 1, %s34
      %p40 = scmp.ge.s32.totalorder %s39, 2
      %s41 = scalar_select %p40, 0, %s39
      %s42 = sadd.s32 1, %s33
      %s43 = scalar_select %p40, %s42, %s33
      %p44 = scmp.ge.s32.totalorder %s43, 2
      %s45 = scalar_select %p44, 0, %s43
      %s46 = ssub.s32 %s33, %s45
      %p47 = scmp.eq.s32.totalorder %s46, 0
      %s49 = sadd.s32 %s48, 1
      %s50 = scalar_select %p47, %s48, %s49
      %p53 = pneg %p47
      %p54 = scmp.eq.s32.totalorder %s26, 3
      %p55 = por %p53, %p54
      %p56 = scmp.ne.s32.totalorder %s48, %s51
      %p57 = scmp.eq.s32.totalorder %s26, 0
      %p58 = por %p56, %p57
      %p59 = scmp.ne.s32.totalorder %s48, %s51
      %p60 = scmp.eq.s32.totalorder %s31, 3
      %p61 = por %p59, %p60
      %p62 = scmp.ne.s32.totalorder %s51, %s52
      %p63 = scmp.eq.s32.totalorder %s31, 0
      %p64 = por %p62, %p63
      %p65 = scmp.ne.s32.totalorder %s51, %s52
      %p66 = scmp.eq.s32.totalorder %s32, 3
      %p67 = por %p65, %p66
      %p69 = scmp.ne.s32.totalorder %s52, %s68
      %p70 = scmp.eq.s32.totalorder %s32, 0
      %p71 = por %p69, %p70
      %s73 = sadd.s32 %s72, 1
      %p76 = scmp.eq.s32.totalorder %s26, 3
      %p77 = scmp.ne.s32.totalorder %s72, %s74
      %p78 = scmp.eq.s32.totalorder %s26, 0
      %p79 = por %p77, %p78
      %p80 = scmp.ne.s32.totalorder %s72, %s74
      %p81 = scmp.eq.s32.totalorder %s31, 3
      %p82 = por %p80, %p81
      %p83 = scmp.ne.s32.totalorder %s74, %s75
      %p84 = scmp.eq.s32.totalorder %s31, 0
      %p85 = por %p83, %p84
      %p86 = scmp.ne.s32.totalorder %s74, %s75
      %p87 = scmp.eq.s32.totalorder %s32, 3
      %p88 = por %p86, %p87
      %p90 = scmp.ne.s32.totalorder %s75, %s89
      %p91 = scmp.eq.s32.totalorder %s32, 0
      %p92 = por %p90, %p91
      %s94 = sadd.s32 %s93, 1
      %p97 = scmp.eq.s32.totalorder %s26, 3
      %p98 = scmp.ne.s32.totalorder %s93, %s95
      %p99 = scmp.eq.s32.totalorder %s26, 0
      %p100 = por %p98, %p99
      %p101 = scmp.ne.s32.totalorder %s93, %s95
      %p102 = scmp.eq.s32.totalorder %s31, 3
      %p103 = por %p101, %p102
      %p104 = scmp.ne.s32.totalorder %s95, %s96
      %p105 = scmp.eq.s32.totalorder %s31, 0
      %p106 = por %p104, %p105
      %p107 = scmp.ne.s32.totalorder %s95, %s96
      %p108 = scmp.eq.s32.totalorder %s32, 3
      %p109 = por %p107, %p108
      %p111 = scmp.ne.s32.totalorder %s96, %s110
      %p112 = scmp.eq.s32.totalorder %s32, 0
      %p113 = por %p111, %p112
      %s115 = sadd.s32 %s114, 1
      %p118 = scmp.eq.s32.totalorder %s26, 3
      %p119 = scmp.ne.s32.totalorder %s114, %s116
      %p120 = scmp.eq.s32.totalorder %s26, 0
      %p121 = por %p119, %p120
      %p122 = scmp.ne.s32.totalorder %s114, %s116
      %p123 = scmp.eq.s32.totalorder %s31, 3
      %p124 = por %p122, %p123
      %p125 = scmp.ne.s32.totalorder %s116, %s117
      %p126 = scmp.eq.s32.totalorder %s31, 0
      %p127 = por %p125, %p126
      %p128 = scmp.ne.s32.totalorder %s116, %s117
      %p129 = scmp.eq.s32.totalorder %s32, 3
      %p130 = por %p128, %p129
      %p132 = scmp.ne.s32.totalorder %s117, %s131
      %p133 = scmp.eq.s32.totalorder %s32, 0
      %p134 = por %p132, %p133
      %s136 = sadd.s32 %s135, 1
      %p139 = scmp.eq.s32.totalorder %s26, 3
      %p140 = scmp.ne.s32.totalorder %s135, %s137
      %p141 = scmp.eq.s32.totalorder %s26, 0
      %p142 = por %p140, %p141
      %p143 = scmp.ne.s32.totalorder %s135, %s137
      %p144 = scmp.eq.s32.totalorder %s31, 3
      %p145 = por %p143, %p144
      %p146 = scmp.ne.s32.totalorder %s137, %s138
      %p147 = scmp.eq.s32.totalorder %s31, 0
      %p148 = por %p146, %p147
      %p149 = scmp.ne.s32.totalorder %s137, %s138
      %p150 = scmp.eq.s32.totalorder %s32, 3
      %p151 = por %p149, %p150
      %p153 = scmp.ne.s32.totalorder %s138, %s152
      %p154 = scmp.eq.s32.totalorder %s32, 0
      %p155 = por %p153, %p154
      %s157 = sadd.s32 %s156, 1
      %p160 = scmp.eq.s32.totalorder %s26, 3
      %p161 = scmp.ne.s32.totalorder %s156, %s158
      %p162 = scmp.eq.s32.totalorder %s26, 0
      %p163 = por %p161, %p162
      %p164 = scmp.ne.s32.totalorder %s156, %s158
      %p165 = scmp.eq.s32.totalorder %s31, 3
      %p166 = por %p164, %p165
      %p167 = scmp.ne.s32.totalorder %s158, %s159
      %p168 = scmp.eq.s32.totalorder %s31, 0
      %p169 = por %p167, %p168
      %p170 = scmp.ne.s32.totalorder %s158, %s159
      %p171 = scmp.eq.s32.totalorder %s32, 3
      %p172 = por %p170, %p171
      %p174 = scmp.ne.s32.totalorder %s159, %s173
      %p175 = scmp.eq.s32.totalorder %s32, 0
      %p176 = por %p174, %p175
      %s178 = sadd.s32 %s177, 1
      %p181 = scmp.eq.s32.totalorder %s26, 3
      %p182 = scmp.ne.s32.totalorder %s177, %s179
      %p183 = scmp.eq.s32.totalorder %s26, 0
      %p184 = por %p182, %p183
      %p185 = scmp.ne.s32.totalorder %s177, %s179
      %p186 = scmp.eq.s32.totalorder %s31, 3
      %p187 = por %p185, %p186
      %p188 = scmp.ne.s32.totalorder %s179, %s180
      %p189 = scmp.eq.s32.totalorder %s31, 0
      %p190 = por %p188, %p189
      %p191 = scmp.ne.s32.totalorder %s179, %s180
      %p192 = scmp.eq.s32.totalorder %s32, 3
      %p193 = por %p191, %p192
      %p195 = scmp.ne.s32.totalorder %s180, %s194
      %p196 = scmp.eq.s32.totalorder %s32, 0
      %p197 = por %p195, %p196
      %s198 = ssub.s32 %s34, %s41
      %p199 = scmp.eq.s32.totalorder %s198, 0
      %s201 = sadd.s32 %s200, 1
      %s202 = scalar_select %p199, %s200, %s201
      %p205 = pneg %p199
      %p206 = scmp.eq.s32.totalorder %s26, 3
      %p207 = por %p205, %p206
      %p208 = scmp.ne.s32.totalorder %s200, %s203
      %p209 = scmp.eq.s32.totalorder %s26, 0
      %p210 = por %p208, %p209
      %p211 = scmp.ne.s32.totalorder %s200, %s203
      %p212 = scmp.eq.s32.totalorder %s31, 3
      %p213 = por %p211, %p212
      %p214 = scmp.ne.s32.totalorder %s203, %s204
      %p215 = scmp.eq.s32.totalorder %s31, 0
      %p216 = por %p214, %p215
      %p217 = scmp.ne.s32.totalorder %s203, %s204
      %p218 = scmp.eq.s32.totalorder %s32, 3
      %p219 = por %p217, %p218
      %p221 = scmp.ne.s32.totalorder %s204, %s220
      %p222 = scmp.eq.s32.totalorder %s32, 0
      %p223 = por %p221, %p222
      %s224 = ssub.s32 %s34, %s41
      %p225 = scmp.eq.s32.totalorder %s224, 0
      %s227 = sadd.s32 %s226, 1
      %s228 = scalar_select %p225, %s226, %s227
      %p231 = pneg %p225
      %p232 = scmp.eq.s32.totalorder %s26, 3
      %p233 = por %p231, %p232
      %p234 = scmp.ne.s32.totalorder %s226, %s229
      %p235 = scmp.eq.s32.totalorder %s26, 0
      %p236 = por %p234, %p235
      %p237 = scmp.ne.s32.totalorder %s226, %s229
      %p238 = scmp.eq.s32.totalorder %s31, 3
      %p239 = por %p237, %p238
      %p240 = scmp.ne.s32.totalorder %s229, %s230
      %p241 = scmp.eq.s32.totalorder %s31, 0
      %p242 = por %p240, %p241
      %p243 = scmp.ne.s32.totalorder %s229, %s230
      %p244 = scmp.eq.s32.totalorder %s32, 3
      %p245 = por %p243, %p244
      %p247 = scmp.ne.s32.totalorder %s230, %s246
      %p248 = scmp.eq.s32.totalorder %s32, 0
      %p249 = por %p247, %p248
      %s250 = ssub.s32 %s33, %s45
      %s251 = ssub.s32 %s34, %s41
      %s252 = sor.u32 %s250, %s251
      %p253 = scmp.eq.s32.totalorder %s252, 0
      %s255 = sadd.s32 %s254, 1
      %s256 = scalar_select %p253, %s254, %s255
      %p259 = pneg %p253
      %p260 = scmp.eq.s32.totalorder %s26, 3
      %p261 = por %p259, %p260
      %p262 = scmp.ne.s32.totalorder %s254, %s257
      %p263 = scmp.eq.s32.totalorder %s26, 0
      %p264 = por %p262, %p263
      %p265 = scmp.ne.s32.totalorder %s254, %s257
      %p266 = scmp.eq.s32.totalorder %s31, 3
      %p267 = por %p265, %p266
      %p268 = scmp.ne.s32.totalorder %s257, %s258
      %p269 = scmp.eq.s32.totalorder %s31, 0
      %p270 = por %p268, %p269
      %p271 = scmp.ne.s32.totalorder %s257, %s258
      %p272 = scmp.eq.s32.totalorder %s32, 3
      %p273 = por %p271, %p272
      %p275 = scmp.ne.s32.totalorder %s258, %s274
      %p276 = scmp.eq.s32.totalorder %s32, 0
      %p277 = por %p275, %p276
      %p278 = scmp.le.s32.totalorder 1, %s26
      %p279 = scmp.lt.s32.totalorder %s26, 5
      %p280 = pnand %p278, %p279
      %p281 = pneg %p280
      // Predicated region
      $region9: #{tpu_custom_call.1} parent=5 // pred_check
        _
      $region10: #{tpu_custom_call.1} parent=5 // pred_check_branch
        %283 = sbr.rel (%p280) target = $region12
      $region11: #{tpu_custom_call.1} parent=5 // pred_region
        %s284 = ssub.s32 %s26, 1
        // Predicated region
        $region13: #{tpu_custom_call.1} parent=11 // pred_check
          %p285 = pneg %p85
        $region14: #{tpu_custom_call.1} parent=11 // pred_check_branch
          %287 = sbr.rel (%p285) target = $region16
        $region15: #{tpu_custom_call.1} parent=11 // pred_region
          %289 = vsyncadd [#allocation7], 0
          %s290 = sshll.u32 %s1, 4
          %s291 = int_to_ptr.hbm [resolvable:$true] %s290
          %s292 = sshll.u32 [#allocation6], 4
          %s293 = int_to_ptr.vmem [resolvable:$true] %s292
          %298 = dma.hbm_to_vmem [thread:$0]  %s291, 16384, %s293, [#allocation7], 256, 256, 16
        $region16: #{tpu_custom_call.1} parent=11 // pred_fallthru
          _
        // Predicated region
        $region17: #{tpu_custom_call.1} parent=11 // pred_check
          %p299 = pneg %p106
        $region18: #{tpu_custom_call.1} parent=11 // pred_check_branch
          %301 = sbr.rel (%p299) target = $region20
        $region19: #{tpu_custom_call.1} parent=11 // pred_region
          %303 = vsyncadd [#allocation7], 0
          %s305 = sshll.u32 %s2, 4
          %s306 = int_to_ptr.hbm [resolvable:$true] %s305
          %s307 = sshll.u32 [#allocation8], 4
          %s308 = int_to_ptr.vmem [resolvable:$true] %s307
          %310 = dma.hbm_to_vmem [thread:$0]  %s306, 32, %s308, [#allocation7]
        $region20: #{tpu_custom_call.1} parent=11 // pred_fallthru
          _
        // Predicated region
        $region21: #{tpu_custom_call.1} parent=11 // pred_check
          %p311 = pneg %p127
        $region22: #{tpu_custom_call.1} parent=11 // pred_check_branch
          %313 = sbr.rel (%p311) target = $region24
        $region23: #{tpu_custom_call.1} parent=11 // pred_region
          %315 = vsyncadd [#allocation10], 0
          %s316 = sshll.u32 %s3, 4
          %s317 = int_to_ptr.hbm [resolvable:$true] %s316
          %s318 = sshll.u32 [#allocation9], 4
          %s319 = int_to_ptr.vmem [resolvable:$true] %s318
          %324 = dma.hbm_to_vmem [thread:$0]  %s317, 4096, %s319, [#allocation10], 128, 128, 8
        $region24: #{tpu_custom_call.1} parent=11 // pred_fallthru
          _
        // Predicated region
        $region25: #{tpu_custom_call.1} parent=11 // pred_check
          %p325 = pneg %p148
        $region26: #{tpu_custom_call.1} parent=11 // pred_check_branch
          %327 = sbr.rel (%p325) target = $region28
        $region27: #{tpu_custom_call.1} parent=11 // pred_region
          _
        $region28: #{tpu_custom_call.1} parent=11 // pred_fallthru
          _
        // Predicated region
        $region29: #{tpu_custom_call.1} parent=11 // pred_check
          %p328 = pneg %p169
        $region30: #{tpu_custom_call.1} parent=11 // pred_check_branch
          %330 = sbr.rel (%p328) target = $region32
        $region31: #{tpu_custom_call.1} parent=11 // pred_region
          %332 = vsyncadd [#allocation10], 0
          %s333 = sshll.u32 %s5, 4
          %s334 = int_to_ptr.hbm [resolvable:$true] %s333
          %s335 = sshll.u32 [#allocation11], 4
          %s336 = int_to_ptr.vmem [resolvable:$true] %s335
          %341 = dma.hbm_to_vmem [thread:$0]  %s334, 4096, %s336, [#allocation10], 256, 256, 16
        $region32: #{tpu_custom_call.1} parent=11 // pred_fallthru
          _
        // Predicated region
        $region33: #{tpu_custom_call.1} parent=11 // pred_check
          %p342 = pneg %p190
        $region34: #{tpu_custom_call.1} parent=11 // pred_check_branch
          %344 = sbr.rel (%p342) target = $region36
        $region35: #{tpu_custom_call.1} parent=11 // pred_region
          _
        $region36: #{tpu_custom_call.1} parent=11 // pred_fallthru
          _
      $region12: #{tpu_custom_call.1} parent=5 // pred_fallthru
        _
      %p345 = scmp.lt.s32.totalorder %s26, 4
      // Predicated region
      $region37: #{tpu_custom_call.1} parent=5 // pred_check
        %p346 = pneg %p345
      $region38: #{tpu_custom_call.1} parent=5 // pred_check_branch
        %348 = sbr.rel (%p346) target = $region40
      $region39: #{tpu_custom_call.1} parent=5 // pred_region
        // Predicated region
        $region41: #{tpu_custom_call.1} parent=39 // pred_check
          %p349 = pneg %p58
        $region42: #{tpu_custom_call.1} parent=39 // pred_check_branch
          %351 = sbr.rel (%p349) target = $region44
        $region43: #{tpu_custom_call.1} parent=39 // pred_region
          %s352 = sand.u32 %s48, 1
          %s353 = scalar_lea.sflag [#allocation4], %s352
          %s354 = sand.u32 %s48, 1
          %s355 = smul.addr %s354, 512
          %s356 = scalar_lea.vmem [#allocation3], %s355
          %s357 = smul.u32 16, %s33
          %359 = vsyncadd %s353, 0
          %s360 = smul.addr %s357, 4
          %s361 = smul.addr %s360, 8
          %s362 = scalar_lea.hbm %s0, %s361
          %s363 = sshll.u32 %s362, 4
          %s364 = int_to_ptr.hbm [resolvable:$true] %s363
          %s365 = sshll.u32 %s356, 4
          %s366 = int_to_ptr.vmem [resolvable:$true] %s365
          %371 = dma.hbm_to_vmem [thread:$0]  %s364, 8192, %s366, %s353, 512, 512, 32
        $region44: #{tpu_custom_call.1} parent=39 // pred_fallthru
          _
        // Predicated region
        $region45: #{tpu_custom_call.1} parent=39 // pred_check
          %p372 = pneg %p210
        $region46: #{tpu_custom_call.1} parent=39 // pred_check_branch
          %374 = sbr.rel (%p372) target = $region48
        $region47: #{tpu_custom_call.1} parent=39 // pred_region
          %s375 = sand.u32 %s200, 1
          %s376 = scalar_lea.sflag [#allocation13], %s375
          %s377 = sand.u32 %s200, 1
          %s378 = smul.addr %s377, 512
          %s379 = scalar_lea.vmem [#allocation12], %s378
          %s380 = smul.u32 2, %s34
          %382 = vsyncadd %s376, 0
          %s383 = smul.addr %s380, 8
          %s384 = scalar_lea.hbm %s7, %s383
          %s385 = sshll.u32 %s384, 4
          %s386 = int_to_ptr.hbm [resolvable:$true] %s385
          %s387 = sshll.u32 %s379, 4
          %s388 = int_to_ptr.vmem [resolvable:$true] %s387
          %393 = dma.hbm_to_vmem [thread:$0]  %s386, 8192, %s388, %s376, 512, 256, 16
        $region48: #{tpu_custom_call.1} parent=39 // pred_fallthru
          _
        // Predicated region
        $region49: #{tpu_custom_call.1} parent=39 // pred_check
          %p394 = pneg %p236
        $region50: #{tpu_custom_call.1} parent=39 // pred_check_branch
          %396 = sbr.rel (%p394) target = $region52
        $region51: #{tpu_custom_call.1} parent=39 // pred_region
          %s397 = smul.u32 2, %s34
          %p398 = scmp.lt.s32.totalorder %s397, 3
          %s399 = scalar_select %p398, %s397, 3
          %s400 = scalar_lea.vmem %s8, %s399
          %s401 = smul.u32 2, %s34
        $region52: #{tpu_custom_call.1} parent=39 // pred_fallthru
          _
      $region40: #{tpu_custom_call.1} parent=5 // pred_fallthru
        _
      %p402 = scmp.le.s32.totalorder 1, %s26
      %p403 = scmp.lt.s32.totalorder %s26, 5
      %p404 = pnand %p402, %p403
      %p405 = pneg %p404
      // Predicated region
      $region53: #{tpu_custom_call.1} parent=5 // pred_check
        _
      $region54: #{tpu_custom_call.1} parent=5 // pred_check_branch
        %407 = sbr.rel (%p404) target = $region56
      $region55: #{tpu_custom_call.1} parent=5 // pred_region
        %s408 = ssub.s32 %s26, 1
        %s409 = sand.u32 %s51, 1
        %s410 = scalar_lea.sflag [#allocation4], %s409
        %s411 = sand.u32 %s51, 1
        %s412 = smul.addr %s411, 512
        %s413 = scalar_lea.vmem [#allocation3], %s412
        // Predicated region
        $region57: #{tpu_custom_call.1} parent=55 // pred_check
          %p414 = pneg %p64
        $region58: #{tpu_custom_call.1} parent=55 // pred_check_branch
          %416 = sbr.rel (%p414) target = $region60
        $region59: #{tpu_custom_call.1} parent=55 // pred_region
          %418 = dma.done %s410, 8192
        $region60: #{tpu_custom_call.1} parent=55 // pred_fallthru
          _
        // Predicated region
        $region61: #{tpu_custom_call.1} parent=55 // pred_check
          %p419 = pneg %p85
        $region62: #{tpu_custom_call.1} parent=55 // pred_check_branch
          %421 = sbr.rel (%p419) target = $region64
        $region63: #{tpu_custom_call.1} parent=55 // pred_region
          %423 = dma.done [#allocation7], 16384
        $region64: #{tpu_custom_call.1} parent=55 // pred_fallthru
          _
        // Predicated region
        $region65: #{tpu_custom_call.1} parent=55 // pred_check
          %p424 = pneg %p106
        $region66: #{tpu_custom_call.1} parent=55 // pred_check_branch
          %426 = sbr.rel (%p424) target = $region68
        $region67: #{tpu_custom_call.1} parent=55 // pred_region
          %428 = dma.done [#allocation7], 32
        $region68: #{tpu_custom_call.1} parent=55 // pred_fallthru
          _
        // Predicated region
        $region69: #{tpu_custom_call.1} parent=55 // pred_check
          %p429 = pneg %p127
        $region70: #{tpu_custom_call.1} parent=55 // pred_check_branch
          %431 = sbr.rel (%p429) target = $region72
        $region71: #{tpu_custom_call.1} parent=55 // pred_region
          %433 = dma.done [#allocation10], 4096
        $region72: #{tpu_custom_call.1} parent=55 // pred_fallthru
          _
        // Predicated region
        $region73: #{tpu_custom_call.1} parent=55 // pred_check
          %p434 = pneg %p169
        $region74: #{tpu_custom_call.1} parent=55 // pred_check_branch
          %436 = sbr.rel (%p434) target = $region76
        $region75: #{tpu_custom_call.1} parent=55 // pred_region
          %438 = dma.done [#allocation10], 4096
        $region76: #{tpu_custom_call.1} parent=55 // pred_fallthru
          _
        %s439 = sand.u32 %s203, 1
        %s440 = scalar_lea.sflag [#allocation13], %s439
        %s441 = sand.u32 %s203, 1
        %s442 = smul.addr %s441, 512
        %s443 = scalar_lea.vmem [#allocation12], %s442
        // Predicated region
        $region77: #{tpu_custom_call.1} parent=55 // pred_check
          %p444 = pneg %p216
        $region78: #{tpu_custom_call.1} parent=55 // pred_check_branch
          %446 = sbr.rel (%p444) target = $region80
        $region79: #{tpu_custom_call.1} parent=55 // pred_region
          %448 = dma.done %s440, 8192
        $region80: #{tpu_custom_call.1} parent=55 // pred_fallthru
          _
        %s449 = sand.u32 %s51, 1
        %s450 = scalar_lea.sflag [#allocation4], %s449
        %s451 = sand.u32 %s51, 1
        %s452 = smul.addr %s451, 512
        %s453 = scalar_lea.vmem [#allocation3], %s452
        %p454 = pneg %p64
        %p455 = pneg %p61
        %p456 = pneg %p85
        %p457 = pneg %p82
        %p458 = pneg %p106
        %p459 = pneg %p103
        %p460 = pneg %p127
        %p461 = pneg %p124
        %p462 = pneg %p148
        %p463 = pneg %p145
        %p464 = pneg %p169
        %p465 = pneg %p166
        %p466 = pneg %p190
        %p467 = pneg %p187
        %s468 = sand.u32 %s203, 1
        %s469 = scalar_lea.sflag [#allocation13], %s468
        %s470 = sand.u32 %s203, 1
        %s471 = smul.addr %s470, 512
        %s472 = scalar_lea.vmem [#allocation12], %s471
        %p473 = pneg %p216
        %p474 = pneg %p213
        %s475 = smul.u32 2, %s36
        %p476 = scmp.lt.s32.totalorder %s475, 3
        %s477 = scalar_select %p476, %s475, 3
        %s478 = scalar_lea.vmem %s8, %s477
        %p479 = pneg %p242
        %p480 = pneg %p239
        %p481 = pneg %p270
        %p482 = pneg %p267
        %s483 = sand.u32 %s257, 1
        %s484 = scalar_lea.sflag [#allocation5], %s483
        %s485 = sand.u32 %s257, 1
        %s486 = smul.addr %s485, 256
        %s487 = scalar_lea.vmem [#allocation14], %s486
        %s488 = smul.u32 16, %s35
        %s489 = smul.u32 2, %s36
        %s490 = smul.u32 2, %s36
        %p491 = scmp.lt.s32.totalorder %s490, 3
        %s492 = scalar_select %p491, %s490, 3
        %s493 = scalar_lea.vmem %s8, %s492
        %s494 = smul.u32 2, %s36
        %s495 = smul.u32 16, %s35
        %s496 = smul.u32 2, %s36
        %p497 = scmp.eq.s32.totalorder %s36, 0
        // Predicated region
        $region81: #{tpu_custom_call.1} parent=55 // pred_check
          %p498 = pneg %p497
        $region82: #{tpu_custom_call.1} parent=55 // pred_check_branch
          %500 = sbr.rel (%p498) target = $region84
        $region83: #{tpu_custom_call.1} parent=55 // pred_region
          %v501 = vld [vmem:[%s413] sm:$0xff]
          %v502 = vld [vmem:[%s413 + $0x8] sm:$0xff]
          %v503 = vld [vmem:[%s413 + $0x10] sm:$0xff]
          %v504 = vld [vmem:[%s413 + $0x18] sm:$0xff]
          %v505 = vld [vmem:[%s413 + $0x20] sm:$0xff]
          %v506 = vld [vmem:[%s413 + $0x28] sm:$0xff]
          %v507 = vld [vmem:[%s413 + $0x30] sm:$0xff]
          %v508 = vld [vmem:[%s413 + $0x38] sm:$0xff]
          %v509 = vld [vmem:[%s413 + $0x40] sm:$0xff]
          %v510 = vld [vmem:[%s413 + $0x48] sm:$0xff]
          %v511 = vld [vmem:[%s413 + $0x50] sm:$0xff]
          %v512 = vld [vmem:[%s413 + $0x58] sm:$0xff]
          %v513 = vld [vmem:[%s413 + $0x60] sm:$0xff]
          %v514 = vld [vmem:[%s413 + $0x68] sm:$0xff]
          %v515 = vld [vmem:[%s413 + $0x70] sm:$0xff]
          %v516 = vld [vmem:[%s413 + $0x78] sm:$0xff]
          %v517 = vld [vmem:[%s413 + $0x80] sm:$0xff]
          %v518 = vld [vmem:[%s413 + $0x88] sm:$0xff]
          %v519 = vld [vmem:[%s413 + $0x90] sm:$0xff]
          %v520 = vld [vmem:[%s413 + $0x98] sm:$0xff]
          %v521 = vld [vmem:[%s413 + $0xa0] sm:$0xff]
          %v522 = vld [vmem:[%s413 + $0xa8] sm:$0xff]
          %v523 = vld [vmem:[%s413 + $0xb0] sm:$0xff]
          %v524 = vld [vmem:[%s413 + $0xb8] sm:$0xff]
          %v525 = vld [vmem:[%s413 + $0xc0] sm:$0xff]
          %v526 = vld [vmem:[%s413 + $0xc8] sm:$0xff]
          %v527 = vld [vmem:[%s413 + $0xd0] sm:$0xff]
          %v528 = vld [vmem:[%s413 + $0xd8] sm:$0xff]
          %v529 = vld [vmem:[%s413 + $0xe0] sm:$0xff]
          %v530 = vld [vmem:[%s413 + $0xe8] sm:$0xff]
          %v531 = vld [vmem:[%s413 + $0xf0] sm:$0xff]
          %v532 = vld [vmem:[%s413 + $0xf8] sm:$0xff]
          %v533 = vld [vmem:[%s413 + $0x100] sm:$0xff]
          %v534 = vld [vmem:[%s413 + $0x108] sm:$0xff]
          %v535 = vld [vmem:[%s413 + $0x110] sm:$0xff]
          %v536 = vld [vmem:[%s413 + $0x118] sm:$0xff]
          %v537 = vld [vmem:[%s413 + $0x120] sm:$0xff]
          %v538 = vld [vmem:[%s413 + $0x128] sm:$0xff]
          %v539 = vld [vmem:[%s413 + $0x130] sm:$0xff]
          %v540 = vld [vmem:[%s413 + $0x138] sm:$0xff]
          %v541 = vld [vmem:[%s413 + $0x140] sm:$0xff]
          %v542 = vld [vmem:[%s413 + $0x148] sm:$0xff]
          %v543 = vld [vmem:[%s413 + $0x150] sm:$0xff]
          %v544 = vld [vmem:[%s413 + $0x158] sm:$0xff]
          %v545 = vld [vmem:[%s413 + $0x160] sm:$0xff]
          %v546 = vld [vmem:[%s413 + $0x168] sm:$0xff]
          %v547 = vld [vmem:[%s413 + $0x170] sm:$0xff]
          %v548 = vld [vmem:[%s413 + $0x178] sm:$0xff]
          %v549 = vld [vmem:[%s413 + $0x180] sm:$0xff]
          %v550 = vld [vmem:[%s413 + $0x188] sm:$0xff]
          %v551 = vld [vmem:[%s413 + $0x190] sm:$0xff]
          %v552 = vld [vmem:[%s413 + $0x198] sm:$0xff]
          %v553 = vld [vmem:[%s413 + $0x1a0] sm:$0xff]
          %v554 = vld [vmem:[%s413 + $0x1a8] sm:$0xff]
          %v555 = vld [vmem:[%s413 + $0x1b0] sm:$0xff]
          %v556 = vld [vmem:[%s413 + $0x1b8] sm:$0xff]
          %v557 = vld [vmem:[%s413 + $0x1c0] sm:$0xff]
          %v558 = vld [vmem:[%s413 + $0x1c8] sm:$0xff]
          %v559 = vld [vmem:[%s413 + $0x1d0] sm:$0xff]
          %v560 = vld [vmem:[%s413 + $0x1d8] sm:$0xff]
          %v561 = vld [vmem:[%s413 + $0x1e0] sm:$0xff]
          %v562 = vld [vmem:[%s413 + $0x1e8] sm:$0xff]
          %v563 = vld [vmem:[%s413 + $0x1f0] sm:$0xff]
          %v564 = vld [vmem:[%s413 + $0x1f8] sm:$0xff]
          %v565 = vmul.f32 %v501, %v501
          %v566 = vmul.f32 %v502, %v502
          %v567 = vmul.f32 %v503, %v503
          %v568 = vmul.f32 %v504, %v504
          %v569 = vmul.f32 %v505, %v505
          %v570 = vmul.f32 %v506, %v506
          %v571 = vmul.f32 %v507, %v507
          %v572 = vmul.f32 %v508, %v508
          %v573 = vmul.f32 %v509, %v509
          %v574 = vmul.f32 %v510, %v510
          %v575 = vmul.f32 %v511, %v511
          %v576 = vmul.f32 %v512, %v512
          %v577 = vmul.f32 %v513, %v513
          %v578 = vmul.f32 %v514, %v514
          %v579 = vmul.f32 %v515, %v515
          %v580 = vmul.f32 %v516, %v516
          %v581 = vmul.f32 %v517, %v517
          %v582 = vmul.f32 %v518, %v518
          %v583 = vmul.f32 %v519, %v519
          %v584 = vmul.f32 %v520, %v520
          %v585 = vmul.f32 %v521, %v521
          %v586 = vmul.f32 %v522, %v522
          %v587 = vmul.f32 %v523, %v523
          %v588 = vmul.f32 %v524, %v524
          %v589 = vmul.f32 %v525, %v525
          %v590 = vmul.f32 %v526, %v526
          %v591 = vmul.f32 %v527, %v527
          %v592 = vmul.f32 %v528, %v528
          %v593 = vmul.f32 %v529, %v529
          %v594 = vmul.f32 %v530, %v530
          %v595 = vmul.f32 %v531, %v531
          %v596 = vmul.f32 %v532, %v532
          %v597 = vmul.f32 %v533, %v533
          %v598 = vmul.f32 %v534, %v534
          %v599 = vmul.f32 %v535, %v535
          %v600 = vmul.f32 %v536, %v536
          %v601 = vmul.f32 %v537, %v537
          %v602 = vmul.f32 %v538, %v538
          %v603 = vmul.f32 %v539, %v539
          %v604 = vmul.f32 %v540, %v540
          %v605 = vmul.f32 %v541, %v541
          %v606 = vmul.f32 %v542, %v542
          %v607 = vmul.f32 %v543, %v543
          %v608 = vmul.f32 %v544, %v544
          %v609 = vmul.f32 %v545, %v545
          %v610 = vmul.f32 %v546, %v546
          %v611 = vmul.f32 %v547, %v547
          %v612 = vmul.f32 %v548, %v548
          %v613 = vmul.f32 %v549, %v549
          %v614 = vmul.f32 %v550, %v550
          %v615 = vmul.f32 %v551, %v551
          %v616 = vmul.f32 %v552, %v552
          %v617 = vmul.f32 %v553, %v553
          %v618 = vmul.f32 %v554, %v554
          %v619 = vmul.f32 %v555, %v555
          %v620 = vmul.f32 %v556, %v556
          %v621 = vmul.f32 %v557, %v557
          %v622 = vmul.f32 %v558, %v558
          %v623 = vmul.f32 %v559, %v559
          %v624 = vmul.f32 %v560, %v560
          %v625 = vmul.f32 %v561, %v561
          %v626 = vmul.f32 %v562, %v562
          %v627 = vmul.f32 %v563, %v563
          %v628 = vmul.f32 %v564, %v564
          %v629 = vadd.f32 %v565, %v566
          %v630 = vadd.f32 %v629, %v567
          %v631 = vadd.f32 %v630, %v568
          %632 = vadd.xlane.f32.xlu0 %v631
          %v633 = vpop.xlane.xlu0 %632
          %v634 = vadd.f32 %v569, %v570
          %v635 = vadd.f32 %v634, %v571
          %v636 = vadd.f32 %v635, %v572
          %637 = vadd.xlane.f32.xlu0 %v636
          %v638 = vpop.xlane.xlu0 %637
          %v639 = vadd.f32 %v573, %v574
          %v640 = vadd.f32 %v639, %v575
          %v641 = vadd.f32 %v640, %v576
          %642 = vadd.xlane.f32.xlu0 %v641
          %v643 = vpop.xlane.xlu0 %642
          %v644 = vadd.f32 %v577, %v578
          %v645 = vadd.f32 %v644, %v579
          %v646 = vadd.f32 %v645, %v580
          %647 = vadd.xlane.f32.xlu0 %v646
          %v648 = vpop.xlane.xlu0 %647
          %v649 = vadd.f32 %v581, %v582
          %v650 = vadd.f32 %v649, %v583
          %v651 = vadd.f32 %v650, %v584
          %652 = vadd.xlane.f32.xlu0 %v651
          %v653 = vpop.xlane.xlu0 %652
          %v654 = vadd.f32 %v585, %v586
          %v655 = vadd.f32 %v654, %v587
          %v656 = vadd.f32 %v655, %v588
          %657 = vadd.xlane.f32.xlu0 %v656
          %v658 = vpop.xlane.xlu0 %657
          %v659 = vadd.f32 %v589, %v590
          %v660 = vadd.f32 %v659, %v591
          %v661 = vadd.f32 %v660, %v592
          %662 = vadd.xlane.f32.xlu0 %v661
          %v663 = vpop.xlane.xlu0 %662
          %v664 = vadd.f32 %v593, %v594
          %v665 = vadd.f32 %v664, %v595
          %v666 = vadd.f32 %v665, %v596
          %667 = vadd.xlane.f32.xlu0 %v666
          %v668 = vpop.xlane.xlu0 %667
          %v669 = vadd.f32 %v597, %v598
          %v670 = vadd.f32 %v669, %v599
          %v671 = vadd.f32 %v670, %v600
          %672 = vadd.xlane.f32.xlu0 %v671
          %v673 = vpop.xlane.xlu0 %672
          %v674 = vadd.f32 %v601, %v602
          %v675 = vadd.f32 %v674, %v603
          %v676 = vadd.f32 %v675, %v604
          %677 = vadd.xlane.f32.xlu0 %v676
          %v678 = vpop.xlane.xlu0 %677
          %v679 = vadd.f32 %v605, %v606
          %v680 = vadd.f32 %v679, %v607
          %v681 = vadd.f32 %v680, %v608
          %682 = vadd.xlane.f32.xlu0 %v681
          %v683 = vpop.xlane.xlu0 %682
          %v684 = vadd.f32 %v609, %v610
          %v685 = vadd.f32 %v684, %v611
          %v686 = vadd.f32 %v685, %v612
          %687 = vadd.xlane.f32.xlu0 %v686
          %v688 = vpop.xlane.xlu0 %687
          %v689 = vadd.f32 %v613, %v614
          %v690 = vadd.f32 %v689, %v615
          %v691 = vadd.f32 %v690, %v616
          %692 = vadd.xlane.f32.xlu0 %v691
          %v693 = vpop.xlane.xlu0 %692
          %v694 = vadd.f32 %v617, %v618
          %v695 = vadd.f32 %v694, %v619
          %v696 = vadd.f32 %v695, %v620
          %697 = vadd.xlane.f32.xlu0 %v696
          %v698 = vpop.xlane.xlu0 %697
          %v699 = vadd.f32 %v621, %v622
          %v700 = vadd.f32 %v699, %v623
          %v701 = vadd.f32 %v700, %v624
          %702 = vadd.xlane.f32.xlu0 %v701
          %v703 = vpop.xlane.xlu0 %702
          %v704 = vadd.f32 %v625, %v626
          %v705 = vadd.f32 %v704, %v627
          %v706 = vadd.f32 %v705, %v628
          %707 = vadd.xlane.f32.xlu0 %v706
          %v708 = vpop.xlane.xlu0 %707
          %v709 = vrsqrt.pop %v633
          %v710 = vmul.f32 %v709, %v633
          %v711 = vmul.f32 %v710, %v709
          %v712 = vmul.f32 0.5, %v711
          %v713 = vsub.f32 1.5, %v712
          %v714 = vmul.f32 %v709, %v713
          %v715 = vmul.f32 %v633, %v714
          %vm716 = vcmp.eq.f32.partialorder %v633, inf
          %v717 = vsel %vm716, %v633, %v715
          %vm718 = vcmp.eq.f32.partialorder %v633, 0.0
          %v719 = vand.u32 %v633, 2147483648
          %v720 = vsel %vm718, %v719, %v717
          %v721 = vrsqrt.pop %v638
          %v722 = vmul.f32 %v721, %v638
          %v723 = vmul.f32 %v722, %v721
          %v724 = vmul.f32 0.5, %v723
          %v725 = vsub.f32 1.5, %v724
          %v726 = vmul.f32 %v721, %v725
          %v727 = vmul.f32 %v638, %v726
          %vm728 = vcmp.eq.f32.partialorder %v638, inf
          %v729 = vsel %vm728, %v638, %v727
          %vm730 = vcmp.eq.f32.partialorder %v638, 0.0
          %v731 = vand.u32 %v638, 2147483648
          %v732 = vsel %vm730, %v731, %v729
          %v733 = vrsqrt.pop %v643
          %v734 = vmul.f32 %v733, %v643
          %v735 = vmul.f32 %v734, %v733
          %v736 = vmul.f32 0.5, %v735
          %v737 = vsub.f32 1.5, %v736
          %v738 = vmul.f32 %v733, %v737
          %v739 = vmul.f32 %v643, %v738
          %vm740 = vcmp.eq.f32.partialorder %v643, inf
          %v741 = vsel %vm740, %v643, %v739
          %vm742 = vcmp.eq.f32.partialorder %v643, 0.0
          %v743 = vand.u32 %v643, 2147483648
          %v744 = vsel %vm742, %v743, %v741
          %v745 = vrsqrt.pop %v648
          %v746 = vmul.f32 %v745, %v648
          %v747 = vmul.f32 %v746, %v745
          %v748 = vmul.f32 0.5, %v747
          %v749 = vsub.f32 1.5, %v748
          %v750 = vmul.f32 %v745, %v749
          %v751 = vmul.f32 %v648, %v750
          %vm752 = vcmp.eq.f32.partialorder %v648, inf
          %v753 = vsel %vm752, %v648, %v751
          %vm754 = vcmp.eq.f32.partialorder %v648, 0.0
          %v755 = vand.u32 %v648, 2147483648
          %v756 = vsel %vm754, %v755, %v753
          %v757 = vrsqrt.pop %v653
          %v758 = vmul.f32 %v757, %v653
          %v759 = vmul.f32 %v758, %v757
          %v760 = vmul.f32 0.5, %v759
          %v761 = vsub.f32 1.5, %v760
          %v762 = vmul.f32 %v757, %v761
          %v763 = vmul.f32 %v653, %v762
          %vm764 = vcmp.eq.f32.partialorder %v653, inf
          %v765 = vsel %vm764, %v653, %v763
          %vm766 = vcmp.eq.f32.partialorder %v653, 0.0
          %v767 = vand.u32 %v653, 2147483648
          %v768 = vsel %vm766, %v767, %v765
          %v769 = vrsqrt.pop %v658
          %v770 = vmul.f32 %v769, %v658
          %v771 = vmul.f32 %v770, %v769
          %v772 = vmul.f32 0.5, %v771
          %v773 = vsub.f32 1.5, %v772
          %v774 = vmul.f32 %v769, %v773
          %v775 = vmul.f32 %v658, %v774
          %vm776 = vcmp.eq.f32.partialorder %v658, inf
          %v777 = vsel %vm776, %v658, %v775
          %vm778 = vcmp.eq.f32.partialorder %v658, 0.0
          %v779 = vand.u32 %v658, 2147483648
          %v780 = vsel %vm778, %v779, %v777
          %v781 = vrsqrt.pop %v663
          %v782 = vmul.f32 %v781, %v663
          %v783 = vmul.f32 %v782, %v781
          %v784 = vmul.f32 0.5, %v783
          %v785 = vsub.f32 1.5, %v784
          %v786 = vmul.f32 %v781, %v785
          %v787 = vmul.f32 %v663, %v786
          %vm788 = vcmp.eq.f32.partialorder %v663, inf
          %v789 = vsel %vm788, %v663, %v787
          %vm790 = vcmp.eq.f32.partialorder %v663, 0.0
          %v791 = vand.u32 %v663, 2147483648
          %v792 = vsel %vm790, %v791, %v789
          %v793 = vrsqrt.pop %v668
          %v794 = vmul.f32 %v793, %v668
          %v795 = vmul.f32 %v794, %v793
          %v796 = vmul.f32 0.5, %v795
          %v797 = vsub.f32 1.5, %v796
          %v798 = vmul.f32 %v793, %v797
          %v799 = vmul.f32 %v668, %v798
          %vm800 = vcmp.eq.f32.partialorder %v668, inf
          %v801 = vsel %vm800, %v668, %v799
          %vm802 = vcmp.eq.f32.partialorder %v668, 0.0
          %v803 = vand.u32 %v668, 2147483648
          %v804 = vsel %vm802, %v803, %v801
          %v805 = vrsqrt.pop %v673
          %v806 = vmul.f32 %v805, %v673
          %v807 = vmul.f32 %v806, %v805
          %v808 = vmul.f32 0.5, %v807
          %v809 = vsub.f32 1.5, %v808
          %v810 = vmul.f32 %v805, %v809
          %v811 = vmul.f32 %v673, %v810
          %vm812 = vcmp.eq.f32.partialorder %v673, inf
          %v813 = vsel %vm812, %v673, %v811
          %vm814 = vcmp.eq.f32.partialorder %v673, 0.0
          %v815 = vand.u32 %v673, 2147483648
          %v816 = vsel %vm814, %v815, %v813
          %v817 = vrsqrt.pop %v678
          %v818 = vmul.f32 %v817, %v678
          %v819 = vmul.f32 %v818, %v817
          %v820 = vmul.f32 0.5, %v819
          %v821 = vsub.f32 1.5, %v820
          %v822 = vmul.f32 %v817, %v821
          %v823 = vmul.f32 %v678, %v822
          %vm824 = vcmp.eq.f32.partialorder %v678, inf
          %v825 = vsel %vm824, %v678, %v823
          %vm826 = vcmp.eq.f32.partialorder %v678, 0.0
          %v827 = vand.u32 %v678, 2147483648
          %v828 = vsel %vm826, %v827, %v825
          %v829 = vrsqrt.pop %v683
          %v830 = vmul.f32 %v829, %v683
          %v831 = vmul.f32 %v830, %v829
          %v832 = vmul.f32 0.5, %v831
          %v833 = vsub.f32 1.5, %v832
          %v834 = vmul.f32 %v829, %v833
          %v835 = vmul.f32 %v683, %v834
          %vm836 = vcmp.eq.f32.partialorder %v683, inf
          %v837 = vsel %vm836, %v683, %v835
          %vm838 = vcmp.eq.f32.partialorder %v683, 0.0
          %v839 = vand.u32 %v683, 2147483648
          %v840 = vsel %vm838, %v839, %v837
          %v841 = vrsqrt.pop %v688
          %v842 = vmul.f32 %v841, %v688
          %v843 = vmul.f32 %v842, %v841
          %v844 = vmul.f32 0.5, %v843
          %v845 = vsub.f32 1.5, %v844
          %v846 = vmul.f32 %v841, %v845
          %v847 = vmul.f32 %v688, %v846
          %vm848 = vcmp.eq.f32.partialorder %v688, inf
          %v849 = vsel %vm848, %v688, %v847
          %vm850 = vcmp.eq.f32.partialorder %v688, 0.0
          %v851 = vand.u32 %v688, 2147483648
          %v852 = vsel %vm850, %v851, %v849
          %v853 = vrsqrt.pop %v693
          %v854 = vmul.f32 %v853, %v693
          %v855 = vmul.f32 %v854, %v853
          %v856 = vmul.f32 0.5, %v855
          %v857 = vsub.f32 1.5, %v856
          %v858 = vmul.f32 %v853, %v857
          %v859 = vmul.f32 %v693, %v858
          %vm860 = vcmp.eq.f32.partialorder %v693, inf
          %v861 = vsel %vm860, %v693, %v859
          %vm862 = vcmp.eq.f32.partialorder %v693, 0.0
          %v863 = vand.u32 %v693, 2147483648
          %v864 = vsel %vm862, %v863, %v861
          %v865 = vrsqrt.pop %v698
          %v866 = vmul.f32 %v865, %v698
          %v867 = vmul.f32 %v866, %v865
          %v868 = vmul.f32 0.5, %v867
          %v869 = vsub.f32 1.5, %v868
          %v870 = vmul.f32 %v865, %v869
          %v871 = vmul.f32 %v698, %v870
          %vm872 = vcmp.eq.f32.partialorder %v698, inf
          %v873 = vsel %vm872, %v698, %v871
          %vm874 = vcmp.eq.f32.partialorder %v698, 0.0
          %v875 = vand.u32 %v698, 2147483648
          %v876 = vsel %vm874, %v875, %v873
          %v877 = vrsqrt.pop %v703
          %v878 = vmul.f32 %v877, %v703
          %v879 = vmul.f32 %v878, %v877
          %v880 = vmul.f32 0.5, %v879
          %v881 = vsub.f32 1.5, %v880
          %v882 = vmul.f32 %v877, %v881
          %v883 = vmul.f32 %v703, %v882
          %vm884 = vcmp.eq.f32.partialorder %v703, inf
          %v885 = vsel %vm884, %v703, %v883
          %vm886 = vcmp.eq.f32.partialorder %v703, 0.0
          %v887 = vand.u32 %v703, 2147483648
          %v888 = vsel %vm886, %v887, %v885
          %v889 = vrsqrt.pop %v708
          %v890 = vmul.f32 %v889, %v708
          %v891 = vmul.f32 %v890, %v889
          %v892 = vmul.f32 0.5, %v891
          %v893 = vsub.f32 1.5, %v892
          %v894 = vmul.f32 %v889, %v893
          %v895 = vmul.f32 %v708, %v894
          %vm896 = vcmp.eq.f32.partialorder %v708, inf
          %v897 = vsel %vm896, %v708, %v895
          %vm898 = vcmp.eq.f32.partialorder %v708, 0.0
          %v899 = vand.u32 %v708, 2147483648
          %v900 = vsel %vm898, %v899, %v897
          %v901 = vmax.f32 %v720, 1e-12
          %v902 = vmax.f32 %v732, 1e-12
          %v903 = vmax.f32 %v744, 1e-12
          %v904 = vmax.f32 %v756, 1e-12
          %v905 = vmax.f32 %v768, 1e-12
          %v906 = vmax.f32 %v780, 1e-12
          %v907 = vmax.f32 %v792, 1e-12
          %v908 = vmax.f32 %v804, 1e-12
          %v909 = vmax.f32 %v816, 1e-12
          %v910 = vmax.f32 %v828, 1e-12
          %v911 = vmax.f32 %v840, 1e-12
          %v912 = vmax.f32 %v852, 1e-12
          %v913 = vmax.f32 %v864, 1e-12
          %v914 = vmax.f32 %v876, 1e-12
          %v915 = vmax.f32 %v888, 1e-12
          %v916 = vmax.f32 %v900, 1e-12
          %v917 = vrcp.pop %v901
          %v918 = vmul.f32 %v901, %v917
          %v919 = vsub.f32 1.0, %v918
          %v920 = vmul.f32 %v917, %v919
          %v921 = vadd.f32 %v917, %v920
          %vm922 = vweird.f32 %v901
          %vm923 = vweird.f32 %v917
          %vm924 = vmor %vm922, %vm923
          %v925 = vsel %vm924, %v917, %v921
          %v926 = vand.u32 2147483647, %v901
          %vm927 = vcmp.eq.f32.partialorder %v926, 8.507059e+37
          %v928 = vand.u32 %v901, 2147483648
          %v929 = vor.u32 1.1754944e-38, %v928
          %v930 = vsel %vm927, %v929, %v925
          %v931 = vrcp.pop %v902
          %v932 = vmul.f32 %v902, %v931
          %v933 = vsub.f32 1.0, %v932
          %v934 = vmul.f32 %v931, %v933
          %v935 = vadd.f32 %v931, %v934
          %vm936 = vweird.f32 %v902
          %vm937 = vweird.f32 %v931
          %vm938 = vmor %vm936, %vm937
          %v939 = vsel %vm938, %v931, %v935
          %v940 = vand.u32 2147483647, %v902
          %vm941 = vcmp.eq.f32.partialorder %v940, 8.507059e+37
          %v942 = vand.u32 %v902, 2147483648
          %v943 = vor.u32 1.1754944e-38, %v942
          %v944 = vsel %vm941, %v943, %v939
          %v945 = vrcp.pop %v903
          %v946 = vmul.f32 %v903, %v945
          %v947 = vsub.f32 1.0, %v946
          %v948 = vmul.f32 %v945, %v947
          %v949 = vadd.f32 %v945, %v948
          %vm950 = vweird.f32 %v903
          %vm951 = vweird.f32 %v945
          %vm952 = vmor %vm950, %vm951
          %v953 = vsel %vm952, %v945, %v949
          %v954 = vand.u32 2147483647, %v903
          %vm955 = vcmp.eq.f32.partialorder %v954, 8.507059e+37
          %v956 = vand.u32 %v903, 2147483648
          %v957 = vor.u32 1.1754944e-38, %v956
          %v958 = vsel %vm955, %v957, %v953
          %v959 = vrcp.pop %v904
          %v960 = vmul.f32 %v904, %v959
          %v961 = vsub.f32 1.0, %v960
          %v962 = vmul.f32 %v959, %v961
          %v963 = vadd.f32 %v959, %v962
          %vm964 = vweird.f32 %v904
          %vm965 = vweird.f32 %v959
          %vm966 = vmor %vm964, %vm965
          %v967 = vsel %vm966, %v959, %v963
          %v968 = vand.u32 2147483647, %v904
          %vm969 = vcmp.eq.f32.partialorder %v968, 8.507059e+37
          %v970 = vand.u32 %v904, 2147483648
          %v971 = vor.u32 1.1754944e-38, %v970
          %v972 = vsel %vm969, %v971, %v967
          %v973 = vrcp.pop %v905
          %v974 = vmul.f32 %v905, %v973
          %v975 = vsub.f32 1.0, %v974
          %v976 = vmul.f32 %v973, %v975
          %v977 = vadd.f32 %v973, %v976
          %vm978 = vweird.f32 %v905
          %vm979 = vweird.f32 %v973
          %vm980 = vmor %vm978, %vm979
          %v981 = vsel %vm980, %v973, %v977
          %v982 = vand.u32 2147483647, %v905
          %vm983 = vcmp.eq.f32.partialorder %v982, 8.507059e+37
          %v984 = vand.u32 %v905, 2147483648
          %v985 = vor.u32 1.1754944e-38, %v984
          %v986 = vsel %vm983, %v985, %v981
          %v987 = vrcp.pop %v906
          %v988 = vmul.f32 %v906, %v987
          %v989 = vsub.f32 1.0, %v988
          %v990 = vmul.f32 %v987, %v989
          %v991 = vadd.f32 %v987, %v990
          %vm992 = vweird.f32 %v906
          %vm993 = vweird.f32 %v987
          %vm994 = vmor %vm992, %vm993
          %v995 = vsel %vm994, %v987, %v991
          %v996 = vand.u32 2147483647, %v906
          %vm997 = vcmp.eq.f32.partialorder %v996, 8.507059e+37
          %v998 = vand.u32 %v906, 2147483648
          %v999 = vor.u32 1.1754944e-38, %v998
          %v1000 = vsel %vm997, %v999, %v995
          %v1001 = vrcp.pop %v907
          %v1002 = vmul.f32 %v907, %v1001
          %v1003 = vsub.f32 1.0, %v1002
          %v1004 = vmul.f32 %v1001, %v1003
          %v1005 = vadd.f32 %v1001, %v1004
          %vm1006 = vweird.f32 %v907
          %vm1007 = vweird.f32 %v1001
          %vm1008 = vmor %vm1006, %vm1007
          %v1009 = vsel %vm1008, %v1001, %v1005
          %v1010 = vand.u32 2147483647, %v907
          %vm1011 = vcmp.eq.f32.partialorder %v1010, 8.507059e+37
          %v1012 = vand.u32 %v907, 2147483648
          %v1013 = vor.u32 1.1754944e-38, %v1012
          %v1014 = vsel %vm1011, %v1013, %v1009
          %v1015 = vrcp.pop %v908
          %v1016 = vmul.f32 %v908, %v1015
          %v1017 = vsub.f32 1.0, %v1016
          %v1018 = vmul.f32 %v1015, %v1017
          %v1019 = vadd.f32 %v1015, %v1018
          %vm1020 = vweird.f32 %v908
          %vm1021 = vweird.f32 %v1015
          %vm1022 = vmor %vm1020, %vm1021
          %v1023 = vsel %vm1022, %v1015, %v1019
          %v1024 = vand.u32 2147483647, %v908
          %vm1025 = vcmp.eq.f32.partialorder %v1024, 8.507059e+37
          %v1026 = vand.u32 %v908, 2147483648
          %v1027 = vor.u32 1.1754944e-38, %v1026
          %v1028 = vsel %vm1025, %v1027, %v1023
          %v1029 = vrcp.pop %v909
          %v1030 = vmul.f32 %v909, %v1029
          %v1031 = vsub.f32 1.0, %v1030
          %v1032 = vmul.f32 %v1029, %v1031
          %v1033 = vadd.f32 %v1029, %v1032
          %vm1034 = vweird.f32 %v909
          %vm1035 = vweird.f32 %v1029
          %vm1036 = vmor %vm1034, %vm1035
          %v1037 = vsel %vm1036, %v1029, %v1033
          %v1038 = vand.u32 2147483647, %v909
          %vm1039 = vcmp.eq.f32.partialorder %v1038, 8.507059e+37
          %v1040 = vand.u32 %v909, 2147483648
          %v1041 = vor.u32 1.1754944e-38, %v1040
          %v1042 = vsel %vm1039, %v1041, %v1037
          %v1043 = vrcp.pop %v910
          %v1044 = vmul.f32 %v910, %v1043
          %v1045 = vsub.f32 1.0, %v1044
          %v1046 = vmul.f32 %v1043, %v1045
          %v1047 = vadd.f32 %v1043, %v1046
          %vm1048 = vweird.f32 %v910
          %vm1049 = vweird.f32 %v1043
          %vm1050 = vmor %vm1048, %vm1049
          %v1051 = vsel %vm1050, %v1043, %v1047
          %v1052 = vand.u32 2147483647, %v910
          %vm1053 = vcmp.eq.f32.partialorder %v1052, 8.507059e+37
          %v1054 = vand.u32 %v910, 2147483648
          %v1055 = vor.u32 1.1754944e-38, %v1054
          %v1056 = vsel %vm1053, %v1055, %v1051
          %v1057 = vrcp.pop %v911
          %v1058 = vmul.f32 %v911, %v1057
          %v1059 = vsub.f32 1.0, %v1058
          %v1060 = vmul.f32 %v1057, %v1059
          %v1061 = vadd.f32 %v1057, %v1060
          %vm1062 = vweird.f32 %v911
          %vm1063 = vweird.f32 %v1057
          %vm1064 = vmor %vm1062, %vm1063
          %v1065 = vsel %vm1064, %v1057, %v1061
          %v1066 = vand.u32 2147483647, %v911
          %vm1067 = vcmp.eq.f32.partialorder %v1066, 8.507059e+37
          %v1068 = vand.u32 %v911, 2147483648
          %v1069 = vor.u32 1.1754944e-38, %v1068
          %v1070 = vsel %vm1067, %v1069, %v1065
          %v1071 = vrcp.pop %v912
          %v1072 = vmul.f32 %v912, %v1071
          %v1073 = vsub.f32 1.0, %v1072
          %v1074 = vmul.f32 %v1071, %v1073
          %v1075 = vadd.f32 %v1071, %v1074
          %vm1076 = vweird.f32 %v912
          %vm1077 = vweird.f32 %v1071
          %vm1078 = vmor %vm1076, %vm1077
          %v1079 = vsel %vm1078, %v1071, %v1075
          %v1080 = vand.u32 2147483647, %v912
          %vm1081 = vcmp.eq.f32.partialorder %v1080, 8.507059e+37
          %v1082 = vand.u32 %v912, 2147483648
          %v1083 = vor.u32 1.1754944e-38, %v1082
          %v1084 = vsel %vm1081, %v1083, %v1079
          %v1085 = vrcp.pop %v913
          %v1086 = vmul.f32 %v913, %v1085
          %v1087 = vsub.f32 1.0, %v1086
          %v1088 = vmul.f32 %v1085, %v1087
          %v1089 = vadd.f32 %v1085, %v1088
          %vm1090 = vweird.f32 %v913
          %vm1091 = vweird.f32 %v1085
          %vm1092 = vmor %vm1090, %vm1091
          %v1093 = vsel %vm1092, %v1085, %v1089
          %v1094 = vand.u32 2147483647, %v913
          %vm1095 = vcmp.eq.f32.partialorder %v1094, 8.507059e+37
          %v1096 = vand.u32 %v913, 2147483648
          %v1097 = vor.u32 1.1754944e-38, %v1096
          %v1098 = vsel %vm1095, %v1097, %v1093
          %v1099 = vrcp.pop %v914
          %v1100 = vmul.f32 %v914, %v1099
          %v1101 = vsub.f32 1.0, %v1100
          %v1102 = vmul.f32 %v1099, %v1101
          %v1103 = vadd.f32 %v1099, %v1102
          %vm1104 = vweird.f32 %v914
          %vm1105 = vweird.f32 %v1099
          %vm1106 = vmor %vm1104, %vm1105
          %v1107 = vsel %vm1106, %v1099, %v1103
          %v1108 = vand.u32 2147483647, %v914
          %vm1109 = vcmp.eq.f32.partialorder %v1108, 8.507059e+37
          %v1110 = vand.u32 %v914, 2147483648
          %v1111 = vor.u32 1.1754944e-38, %v1110
          %v1112 = vsel %vm1109, %v1111, %v1107
          %v1113 = vrcp.pop %v915
          %v1114 = vmul.f32 %v915, %v1113
          %v1115 = vsub.f32 1.0, %v1114
          %v1116 = vmul.f32 %v1113, %v1115
          %v1117 = vadd.f32 %v1113, %v1116
          %vm1118 = vweird.f32 %v915
          %vm1119 = vweird.f32 %v1113
          %vm1120 = vmor %vm1118, %vm1119
          %v1121 = vsel %vm1120, %v1113, %v1117
          %v1122 = vand.u32 2147483647, %v915
          %vm1123 = vcmp.eq.f32.partialorder %v1122, 8.507059e+37
          %v1124 = vand.u32 %v915, 2147483648
          %v1125 = vor.u32 1.1754944e-38, %v1124
          %v1126 = vsel %vm1123, %v1125, %v1121
          %v1127 = vrcp.pop %v916
          %v1128 = vmul.f32 %v916, %v1127
          %v1129 = vsub.f32 1.0, %v1128
          %v1130 = vmul.f32 %v1127, %v1129
          %v1131 = vadd.f32 %v1127, %v1130
          %vm1132 = vweird.f32 %v916
          %vm1133 = vweird.f32 %v1127
          %vm1134 = vmor %vm1132, %vm1133
          %v1135 = vsel %vm1134, %v1127, %v1131
          %v1136 = vand.u32 2147483647, %v916
          %vm1137 = vcmp.eq.f32.partialorder %v1136, 8.507059e+37
          %v1138 = vand.u32 %v916, 2147483648
          %v1139 = vor.u32 1.1754944e-38, %v1138
          %v1140 = vsel %vm1137, %v1139, %v1135
          %v1141 = vmul.f32 %v501, %v930
          %v1142 = vmul.f32 %v502, %v930
          %v1143 = vmul.f32 %v503, %v930
          %v1144 = vmul.f32 %v504, %v930
          %v1145 = vmul.f32 %v505, %v944
          %v1146 = vmul.f32 %v506, %v944
          %v1147 = vmul.f32 %v507, %v944
          %v1148 = vmul.f32 %v508, %v944
          %v1149 = vmul.f32 %v509, %v958
          %v1150 = vmul.f32 %v510, %v958
          %v1151 = vmul.f32 %v511, %v958
          %v1152 = vmul.f32 %v512, %v958
          %v1153 = vmul.f32 %v513, %v972
          %v1154 = vmul.f32 %v514, %v972
          %v1155 = vmul.f32 %v515, %v972
          %v1156 = vmul.f32 %v516, %v972
          %v1157 = vmul.f32 %v517, %v986
          %v1158 = vmul.f32 %v518, %v986
          %v1159 = vmul.f32 %v519, %v986
          %v1160 = vmul.f32 %v520, %v986
          %v1161 = vmul.f32 %v521, %v1000
          %v1162 = vmul.f32 %v522, %v1000
          %v1163 = vmul.f32 %v523, %v1000
          %v1164 = vmul.f32 %v524, %v1000
          %v1165 = vmul.f32 %v525, %v1014
          %v1166 = vmul.f32 %v526, %v1014
          %v1167 = vmul.f32 %v527, %v1014
          %v1168 = vmul.f32 %v528, %v1014
          %v1169 = vmul.f32 %v529, %v1028
          %v1170 = vmul.f32 %v530, %v1028
          %v1171 = vmul.f32 %v531, %v1028
          %v1172 = vmul.f32 %v532, %v1028
          %v1173 = vmul.f32 %v533, %v1042
          %v1174 = vmul.f32 %v534, %v1042
          %v1175 = vmul.f32 %v535, %v1042
          %v1176 = vmul.f32 %v536, %v1042
          %v1177 = vmul.f32 %v537, %v1056
          %v1178 = vmul.f32 %v538, %v1056
          %v1179 = vmul.f32 %v539, %v1056
          %v1180 = vmul.f32 %v540, %v1056
          %v1181 = vmul.f32 %v541, %v1070
          %v1182 = vmul.f32 %v542, %v1070
          %v1183 = vmul.f32 %v543, %v1070
          %v1184 = vmul.f32 %v544, %v1070
          %v1185 = vmul.f32 %v545, %v1084
          %v1186 = vmul.f32 %v546, %v1084
          %v1187 = vmul.f32 %v547, %v1084
          %v1188 = vmul.f32 %v548, %v1084
          %v1189 = vmul.f32 %v549, %v1098
          %v1190 = vmul.f32 %v550, %v1098
          %v1191 = vmul.f32 %v551, %v1098
          %v1192 = vmul.f32 %v552, %v1098
          %v1193 = vmul.f32 %v553, %v1112
          %v1194 = vmul.f32 %v554, %v1112
          %v1195 = vmul.f32 %v555, %v1112
          %v1196 = vmul.f32 %v556, %v1112
          %v1197 = vmul.f32 %v557, %v1126
          %v1198 = vmul.f32 %v558, %v1126
          %v1199 = vmul.f32 %v559, %v1126
          %v1200 = vmul.f32 %v560, %v1126
          %v1201 = vmul.f32 %v561, %v1140
          %v1202 = vmul.f32 %v562, %v1140
          %v1203 = vmul.f32 %v563, %v1140
          %v1204 = vmul.f32 %v564, %v1140
          %v1205 = vld [vmem:[#allocation6] sm:$0xff]
          %v1206 = vld [vmem:[#allocation6 + $0x8] sm:$0xff]
          %v1207 = vld [vmem:[#allocation6 + $0x10] sm:$0xff]
          %v1208 = vld [vmem:[#allocation6 + $0x18] sm:$0xff]
          %v1209 = vld [vmem:[#allocation6 + $0x20] sm:$0xff]
          %v1210 = vld [vmem:[#allocation6 + $0x28] sm:$0xff]
          %v1211 = vld [vmem:[#allocation6 + $0x30] sm:$0xff]
          %v1212 = vld [vmem:[#allocation6 + $0x38] sm:$0xff]
          %v1213 = vld [vmem:[#allocation6 + $0x40] sm:$0xff]
          %v1214 = vld [vmem:[#allocation6 + $0x48] sm:$0xff]
          %v1215 = vld [vmem:[#allocation6 + $0x50] sm:$0xff]
          %v1216 = vld [vmem:[#allocation6 + $0x58] sm:$0xff]
          %v1217 = vld [vmem:[#allocation6 + $0x60] sm:$0xff]
          %v1218 = vld [vmem:[#allocation6 + $0x68] sm:$0xff]
          %v1219 = vld [vmem:[#allocation6 + $0x70] sm:$0xff]
          %v1220 = vld [vmem:[#allocation6 + $0x78] sm:$0xff]
          %v1221 = vld [vmem:[#allocation6 + $0x80] sm:$0xff]
          %v1222 = vld [vmem:[#allocation6 + $0x88] sm:$0xff]
          %v1223 = vld [vmem:[#allocation6 + $0x90] sm:$0xff]
          %v1224 = vld [vmem:[#allocation6 + $0x98] sm:$0xff]
          %v1225 = vld [vmem:[#allocation6 + $0xa0] sm:$0xff]
          %v1226 = vld [vmem:[#allocation6 + $0xa8] sm:$0xff]
          %v1227 = vld [vmem:[#allocation6 + $0xb0] sm:$0xff]
          %v1228 = vld [vmem:[#allocation6 + $0xb8] sm:$0xff]
          %v1229 = vld [vmem:[#allocation6 + $0xc0] sm:$0xff]
          %v1230 = vld [vmem:[#allocation6 + $0xc8] sm:$0xff]
          %v1231 = vld [vmem:[#allocation6 + $0xd0] sm:$0xff]
          %v1232 = vld [vmem:[#allocation6 + $0xd8] sm:$0xff]
          %v1233 = vld [vmem:[#allocation6 + $0xe0] sm:$0xff]
          %v1234 = vld [vmem:[#allocation6 + $0xe8] sm:$0xff]
          %v1235 = vld [vmem:[#allocation6 + $0xf0] sm:$0xff]
          %v1236 = vld [vmem:[#allocation6 + $0xf8] sm:$0xff]
          %v1237 = vld [vmem:[#allocation6 + $0x100] sm:$0xff]
          %v1238 = vld [vmem:[#allocation6 + $0x108] sm:$0xff]
          %v1239 = vld [vmem:[#allocation6 + $0x110] sm:$0xff]
          %v1240 = vld [vmem:[#allocation6 + $0x118] sm:$0xff]
          %v1241 = vld [vmem:[#allocation6 + $0x120] sm:$0xff]
          %v1242 = vld [vmem:[#allocation6 + $0x128] sm:$0xff]
          %v1243 = vld [vmem:[#allocation6 + $0x130] sm:$0xff]
          %v1244 = vld [vmem:[#allocation6 + $0x138] sm:$0xff]
          %v1245 = vld [vmem:[#allocation6 + $0x140] sm:$0xff]
          %v1246 = vld [vmem:[#allocation6 + $0x148] sm:$0xff]
          %v1247 = vld [vmem:[#allocation6 + $0x150] sm:$0xff]
          %v1248 = vld [vmem:[#allocation6 + $0x158] sm:$0xff]
          %v1249 = vld [vmem:[#allocation6 + $0x160] sm:$0xff]
          %v1250 = vld [vmem:[#allocation6 + $0x168] sm:$0xff]
          %v1251 = vld [vmem:[#allocation6 + $0x170] sm:$0xff]
          %v1252 = vld [vmem:[#allocation6 + $0x178] sm:$0xff]
          %v1253 = vld [vmem:[#allocation6 + $0x180] sm:$0xff]
          %v1254 = vld [vmem:[#allocation6 + $0x188] sm:$0xff]
          %v1255 = vld [vmem:[#allocation6 + $0x190] sm:$0xff]
          %v1256 = vld [vmem:[#allocation6 + $0x198] sm:$0xff]
          %v1257 = vld [vmem:[#allocation6 + $0x1a0] sm:$0xff]
          %v1258 = vld [vmem:[#allocation6 + $0x1a8] sm:$0xff]
          %v1259 = vld [vmem:[#allocation6 + $0x1b0] sm:$0xff]
          %v1260 = vld [vmem:[#allocation6 + $0x1b8] sm:$0xff]
          %v1261 = vld [vmem:[#allocation6 + $0x1c0] sm:$0xff]
          %v1262 = vld [vmem:[#allocation6 + $0x1c8] sm:$0xff]
          %v1263 = vld [vmem:[#allocation6 + $0x1d0] sm:$0xff]
          %v1264 = vld [vmem:[#allocation6 + $0x1d8] sm:$0xff]
          %v1265 = vld [vmem:[#allocation6 + $0x1e0] sm:$0xff]
          %v1266 = vld [vmem:[#allocation6 + $0x1e8] sm:$0xff]
          %v1267 = vld [vmem:[#allocation6 + $0x1f0] sm:$0xff]
          %v1268 = vld [vmem:[#allocation6 + $0x1f8] sm:$0xff]
          %v1269 = vld [vmem:[#allocation6 + $0x200] sm:$0xff]
          %v1270 = vld [vmem:[#allocation6 + $0x208] sm:$0xff]
          %v1271 = vld [vmem:[#allocation6 + $0x210] sm:$0xff]
          %v1272 = vld [vmem:[#allocation6 + $0x218] sm:$0xff]
          %v1273 = vld [vmem:[#allocation6 + $0x220] sm:$0xff]
          %v1274 = vld [vmem:[#allocation6 + $0x228] sm:$0xff]
          %v1275 = vld [vmem:[#allocation6 + $0x230] sm:$0xff]
          %v1276 = vld [vmem:[#allocation6 + $0x238] sm:$0xff]
          %v1277 = vld [vmem:[#allocation6 + $0x240] sm:$0xff]
          %v1278 = vld [vmem:[#allocation6 + $0x248] sm:$0xff]
          %v1279 = vld [vmem:[#allocation6 + $0x250] sm:$0xff]
          %v1280 = vld [vmem:[#allocation6 + $0x258] sm:$0xff]
          %v1281 = vld [vmem:[#allocation6 + $0x260] sm:$0xff]
          %v1282 = vld [vmem:[#allocation6 + $0x268] sm:$0xff]
          %v1283 = vld [vmem:[#allocation6 + $0x270] sm:$0xff]
          %v1284 = vld [vmem:[#allocation6 + $0x278] sm:$0xff]
          %v1285 = vld [vmem:[#allocation6 + $0x280] sm:$0xff]
          %v1286 = vld [vmem:[#allocation6 + $0x288] sm:$0xff]
          %v1287 = vld [vmem:[#allocation6 + $0x290] sm:$0xff]
          %v1288 = vld [vmem:[#allocation6 + $0x298] sm:$0xff]
          %v1289 = vld [vmem:[#allocation6 + $0x2a0] sm:$0xff]
          %v1290 = vld [vmem:[#allocation6 + $0x2a8] sm:$0xff]
          %v1291 = vld [vmem:[#allocation6 + $0x2b0] sm:$0xff]
          %v1292 = vld [vmem:[#allocation6 + $0x2b8] sm:$0xff]
          %v1293 = vld [vmem:[#allocation6 + $0x2c0] sm:$0xff]
          %v1294 = vld [vmem:[#allocation6 + $0x2c8] sm:$0xff]
          %v1295 = vld [vmem:[#allocation6 + $0x2d0] sm:$0xff]
          %v1296 = vld [vmem:[#allocation6 + $0x2d8] sm:$0xff]
          %v1297 = vld [vmem:[#allocation6 + $0x2e0] sm:$0xff]
          %v1298 = vld [vmem:[#allocation6 + $0x2e8] sm:$0xff]
          %v1299 = vld [vmem:[#allocation6 + $0x2f0] sm:$0xff]
          %v1300 = vld [vmem:[#allocation6 + $0x2f8] sm:$0xff]
          %v1301 = vld [vmem:[#allocation6 + $0x300] sm:$0xff]
          %v1302 = vld [vmem:[#allocation6 + $0x308] sm:$0xff]
          %v1303 = vld [vmem:[#allocation6 + $0x310] sm:$0xff]
          %v1304 = vld [vmem:[#allocation6 + $0x318] sm:$0xff]
          %v1305 = vld [vmem:[#allocation6 + $0x320] sm:$0xff]
          %v1306 = vld [vmem:[#allocation6 + $0x328] sm:$0xff]
          %v1307 = vld [vmem:[#allocation6 + $0x330] sm:$0xff]
          %v1308 = vld [vmem:[#allocation6 + $0x338] sm:$0xff]
          %v1309 = vld [vmem:[#allocation6 + $0x340] sm:$0xff]
          %v1310 = vld [vmem:[#allocation6 + $0x348] sm:$0xff]
          %v1311 = vld [vmem:[#allocation6 + $0x350] sm:$0xff]
          %v1312 = vld [vmem:[#allocation6 + $0x358] sm:$0xff]
          %v1313 = vld [vmem:[#allocation6 + $0x360] sm:$0xff]
          %v1314 = vld [vmem:[#allocation6 + $0x368] sm:$0xff]
          %v1315 = vld [vmem:[#allocation6 + $0x370] sm:$0xff]
          %v1316 = vld [vmem:[#allocation6 + $0x378] sm:$0xff]
          %v1317 = vld [vmem:[#allocation6 + $0x380] sm:$0xff]
          %v1318 = vld [vmem:[#allocation6 + $0x388] sm:$0xff]
          %v1319 = vld [vmem:[#allocation6 + $0x390] sm:$0xff]
          %v1320 = vld [vmem:[#allocation6 + $0x398] sm:$0xff]
          %v1321 = vld [vmem:[#allocation6 + $0x3a0] sm:$0xff]
          %v1322 = vld [vmem:[#allocation6 + $0x3a8] sm:$0xff]
          %v1323 = vld [vmem:[#allocation6 + $0x3b0] sm:$0xff]
          %v1324 = vld [vmem:[#allocation6 + $0x3b8] sm:$0xff]
          %v1325 = vld [vmem:[#allocation6 + $0x3c0] sm:$0xff]
          %v1326 = vld [vmem:[#allocation6 + $0x3c8] sm:$0xff]
          %v1327 = vld [vmem:[#allocation6 + $0x3d0] sm:$0xff]
          %v1328 = vld [vmem:[#allocation6 + $0x3d8] sm:$0xff]
          %v1329 = vld [vmem:[#allocation6 + $0x3e0] sm:$0xff]
          %v1330 = vld [vmem:[#allocation6 + $0x3e8] sm:$0xff]
          %v1331 = vld [vmem:[#allocation6 + $0x3f0] sm:$0xff]
          %v1332 = vld [vmem:[#allocation6 + $0x3f8] sm:$0xff]
          %v1333 = vld [vmem:[#allocation8] sm:$0x3]
          %v1335 = vperm.slane %v1333, 0
          %v1336 = vperm.slane %v1333, 1
          %1339 = vmatpush.msra.mxu0 %v1235
          %1340 = vmatpush.msra.mxu0 %v1233
          %1341 = vmatpush.msra.mxu0 %v1231
          %1342 = vmatpush.msra.mxu0 %v1229
          %1343 = vmatpush.msra.mxu0 %v1227
          %1344 = vmatpush.msra.mxu0 %v1225
          %1345 = vmatpush.msra.mxu0 %v1223
          %1346 = vmatpush.msra.mxu0 %v1221
          %1347 = vmatpush.msra.mxu0 %v1219
          %1348 = vmatpush.msra.mxu0 %v1217
          %1349 = vmatpush.msra.mxu0 %v1215
          %1350 = vmatpush.msra.mxu0 %v1213
          %1351 = vmatpush.msra.mxu0 %v1211
          %1352 = vmatpush.msra.mxu0 %v1209
          %1353 = vmatpush.msra.mxu0 %v1207
          %1354 = vmatpush.msra.mxu0 %v1205
          %1355 = vmatmul.f32.gmra.mxu0 %v1141
          %v1356 = vpop.f32.mrf.mxu0
          %v1357 = vadd.f32 %v1335, %v1356
          %1358 = vmatmul.f32.gmra.mxu0 %v1145
          %v1359 = vpop.f32.mrf.mxu0
          %v1360 = vadd.f32 %v1335, %v1359
          %1361 = vmatmul.f32.gmra.mxu0 %v1149
          %v1362 = vpop.f32.mrf.mxu0
          %v1363 = vadd.f32 %v1335, %v1362
          %1364 = vmatmul.f32.gmra.mxu0 %v1153
          %v1365 = vpop.f32.mrf.mxu0
          %v1366 = vadd.f32 %v1335, %v1365
          %1367 = vmatmul.f32.gmra.mxu0 %v1157
          %v1368 = vpop.f32.mrf.mxu0
          %v1369 = vadd.f32 %v1335, %v1368
          %1370 = vmatmul.f32.gmra.mxu0 %v1161
          %v1371 = vpop.f32.mrf.mxu0
          %v1372 = vadd.f32 %v1335, %v1371
          %1373 = vmatmul.f32.gmra.mxu0 %v1165
          %v1374 = vpop.f32.mrf.mxu0
          %v1375 = vadd.f32 %v1335, %v1374
          %1376 = vmatmul.f32.gmra.mxu0 %v1169
          %v1377 = vpop.f32.mrf.mxu0
          %v1378 = vadd.f32 %v1335, %v1377
          %1379 = vmatmul.f32.gmra.mxu0 %v1173
          %v1380 = vpop.f32.mrf.mxu0
          %v1381 = vadd.f32 %v1335, %v1380
          %1382 = vmatmul.f32.gmra.mxu0 %v1177
          %v1383 = vpop.f32.mrf.mxu0
          %v1384 = vadd.f32 %v1335, %v1383
          %1385 = vmatmul.f32.gmra.mxu0 %v1181
          %v1386 = vpop.f32.mrf.mxu0
          %v1387 = vadd.f32 %v1335, %v1386
          %1388 = vmatmul.f32.gmra.mxu0 %v1185
          %v1389 = vpop.f32.mrf.mxu0
          %v1390 = vadd.f32 %v1335, %v1389
          %1391 = vmatmul.f32.gmra.mxu0 %v1189
          %v1392 = vpop.f32.mrf.mxu0
          %v1393 = vadd.f32 %v1335, %v1392
          %1394 = vmatmul.f32.gmra.mxu0 %v1193
          %v1395 = vpop.f32.mrf.mxu0
          %v1396 = vadd.f32 %v1335, %v1395
          %1397 = vmatmul.f32.gmra.mxu0 %v1197
          %v1398 = vpop.f32.mrf.mxu0
          %v1399 = vadd.f32 %v1335, %v1398
          %1400 = vmatmul.f32.gmra.mxu0 %v1201
          %v1401 = vpop.f32.mrf.mxu0
          %v1402 = vadd.f32 %v1335, %v1401
          %1403 = vdwg.mxu0
          %1404 = vmatpush.msra.mxu0 %v1267
          %1405 = vmatpush.msra.mxu0 %v1265
          %1406 = vmatpush.msra.mxu0 %v1263
          %1407 = vmatpush.msra.mxu0 %v1261
          %1408 = vmatpush.msra.mxu0 %v1259
          %1409 = vmatpush.msra.mxu0 %v1257
          %1410 = vmatpush.msra.mxu0 %v1255
          %1411 = vmatpush.msra.mxu0 %v1253
          %1412 = vmatpush.msra.mxu0 %v1251
          %1413 = vmatpush.msra.mxu0 %v1249
          %1414 = vmatpush.msra.mxu0 %v1247
          %1415 = vmatpush.msra.mxu0 %v1245
          %1416 = vmatpush.msra.mxu0 %v1243
          %1417 = vmatpush.msra.mxu0 %v1241
          %1418 = vmatpush.msra.mxu0 %v1239
          %1419 = vmatpush.msra.mxu0 %v1237
          %1420 = vmatmul.f32.gmra.mxu0 %v1142
          %v1421 = vpop.f32.mrf.mxu0
          %v1422 = vadd.f32 %v1357, %v1421
          %1423 = vmatmul.f32.gmra.mxu0 %v1146
          %v1424 = vpop.f32.mrf.mxu0
          %v1425 = vadd.f32 %v1360, %v1424
          %1426 = vmatmul.f32.gmra.mxu0 %v1150
          %v1427 = vpop.f32.mrf.mxu0
          %v1428 = vadd.f32 %v1363, %v1427
          %1429 = vmatmul.f32.gmra.mxu0 %v1154
          %v1430 = vpop.f32.mrf.mxu0
          %v1431 = vadd.f32 %v1366, %v1430
          %1432 = vmatmul.f32.gmra.mxu0 %v1158
          %v1433 = vpop.f32.mrf.mxu0
          %v1434 = vadd.f32 %v1369, %v1433
          %1435 = vmatmul.f32.gmra.mxu0 %v1162
          %v1436 = vpop.f32.mrf.mxu0
          %v1437 = vadd.f32 %v1372, %v1436
          %1438 = vmatmul.f32.gmra.mxu0 %v1166
          %v1439 = vpop.f32.mrf.mxu0
          %v1440 = vadd.f32 %v1375, %v1439
          %1441 = vmatmul.f32.gmra.mxu0 %v1170
          %v1442 = vpop.f32.mrf.mxu0
          %v1443 = vadd.f32 %v1378, %v1442
          %1444 = vmatmul.f32.gmra.mxu0 %v1174
          %v1445 = vpop.f32.mrf.mxu0
          %v1446 = vadd.f32 %v1381, %v1445
          %1447 = vmatmul.f32.gmra.mxu0 %v1178
          %v1448 = vpop.f32.mrf.mxu0
          %v1449 = vadd.f32 %v1384, %v1448
          %1450 = vmatmul.f32.gmra.mxu0 %v1182
          %v1451 = vpop.f32.mrf.mxu0
          %v1452 = vadd.f32 %v1387, %v1451
          %1453 = vmatmul.f32.gmra.mxu0 %v1186
          %v1454 = vpop.f32.mrf.mxu0
          %v1455 = vadd.f32 %v1390, %v1454
          %1456 = vmatmul.f32.gmra.mxu0 %v1190
          %v1457 = vpop.f32.mrf.mxu0
          %v1458 = vadd.f32 %v1393, %v1457
          %1459 = vmatmul.f32.gmra.mxu0 %v1194
          %v1460 = vpop.f32.mrf.mxu0
          %v1461 = vadd.f32 %v1396, %v1460
          %1462 = vmatmul.f32.gmra.mxu0 %v1198
          %v1463 = vpop.f32.mrf.mxu0
          %v1464 = vadd.f32 %v1399, %v1463
          %1465 = vmatmul.f32.gmra.mxu0 %v1202
          %v1466 = vpop.f32.mrf.mxu0
          %v1467 = vadd.f32 %v1402, %v1466
          %1468 = vdwg.mxu0
          %1469 = vmatpush.msra.mxu0 %v1299
          %1470 = vmatpush.msra.mxu0 %v1297
          %1471 = vmatpush.msra.mxu0 %v1295
          %1472 = vmatpush.msra.mxu0 %v1293
          %1473 = vmatpush.msra.mxu0 %v1291
          %1474 = vmatpush.msra.mxu0 %v1289
          %1475 = vmatpush.msra.mxu0 %v1287
          %1476 = vmatpush.msra.mxu0 %v1285
          %1477 = vmatpush.msra.mxu0 %v1283
          %1478 = vmatpush.msra.mxu0 %v1281
          %1479 = vmatpush.msra.mxu0 %v1279
          %1480 = vmatpush.msra.mxu0 %v1277
          %1481 = vmatpush.msra.mxu0 %v1275
          %1482 = vmatpush.msra.mxu0 %v1273
          %1483 = vmatpush.msra.mxu0 %v1271
          %1484 = vmatpush.msra.mxu0 %v1269
          %1485 = vmatmul.f32.gmra.mxu0 %v1143
          %v1486 = vpop.f32.mrf.mxu0
          %v1487 = vadd.f32 %v1422, %v1486
          %1488 = vmatmul.f32.gmra.mxu0 %v1147
          %v1489 = vpop.f32.mrf.mxu0
          %v1490 = vadd.f32 %v1425, %v1489
          %1491 = vmatmul.f32.gmra.mxu0 %v1151
          %v1492 = vpop.f32.mrf.mxu0
          %v1493 = vadd.f32 %v1428, %v1492
          %1494 = vmatmul.f32.gmra.mxu0 %v1155
          %v1495 = vpop.f32.mrf.mxu0
          %v1496 = vadd.f32 %v1431, %v1495
          %1497 = vmatmul.f32.gmra.mxu0 %v1159
          %v1498 = vpop.f32.mrf.mxu0
          %v1499 = vadd.f32 %v1434, %v1498
          %1500 = vmatmul.f32.gmra.mxu0 %v1163
          %v1501 = vpop.f32.mrf.mxu0
          %v1502 = vadd.f32 %v1437, %v1501
          %1503 = vmatmul.f32.gmra.mxu0 %v1167
          %v1504 = vpop.f32.mrf.mxu0
          %v1505 = vadd.f32 %v1440, %v1504
          %1506 = vmatmul.f32.gmra.mxu0 %v1171
          %v1507 = vpop.f32.mrf.mxu0
          %v1508 = vadd.f32 %v1443, %v1507
          %1509 = vmatmul.f32.gmra.mxu0 %v1175
          %v1510 = vpop.f32.mrf.mxu0
          %v1511 = vadd.f32 %v1446, %v1510
          %1512 = vmatmul.f32.gmra.mxu0 %v1179
          %v1513 = vpop.f32.mrf.mxu0
          %v1514 = vadd.f32 %v1449, %v1513
          %1515 = vmatmul.f32.gmra.mxu0 %v1183
          %v1516 = vpop.f32.mrf.mxu0
          %v1517 = vadd.f32 %v1452, %v1516
          %1518 = vmatmul.f32.gmra.mxu0 %v1187
          %v1519 = vpop.f32.mrf.mxu0
          %v1520 = vadd.f32 %v1455, %v1519
          %1521 = vmatmul.f32.gmra.mxu0 %v1191
          %v1522 = vpop.f32.mrf.mxu0
          %v1523 = vadd.f32 %v1458, %v1522
          %1524 = vmatmul.f32.gmra.mxu0 %v1195
          %v1525 = vpop.f32.mrf.mxu0
          %v1526 = vadd.f32 %v1461, %v1525
          %1527 = vmatmul.f32.gmra.mxu0 %v1199
          %v1528 = vpop.f32.mrf.mxu0
          %v1529 = vadd.f32 %v1464, %v1528
          %1530 = vmatmul.f32.gmra.mxu0 %v1203
          %v1531 = vpop.f32.mrf.mxu0
          %v1532 = vadd.f32 %v1467, %v1531
          %1533 = vdwg.mxu0
          %1534 = vmatpush.msra.mxu0 %v1331
          %1535 = vmatpush.msra.mxu0 %v1329
          %1536 = vmatpush.msra.mxu0 %v1327
          %1537 = vmatpush.msra.mxu0 %v1325
          %1538 = vmatpush.msra.mxu0 %v1323
          %1539 = vmatpush.msra.mxu0 %v1321
          %1540 = vmatpush.msra.mxu0 %v1319
          %1541 = vmatpush.msra.mxu0 %v1317
          %1542 = vmatpush.msra.mxu0 %v1315
          %1543 = vmatpush.msra.mxu0 %v1313
          %1544 = vmatpush.msra.mxu0 %v1311
          %1545 = vmatpush.msra.mxu0 %v1309
          %1546 = vmatpush.msra.mxu0 %v1307
          %1547 = vmatpush.msra.mxu0 %v1305
          %1548 = vmatpush.msra.mxu0 %v1303
          %1549 = vmatpush.msra.mxu0 %v1301
          %1550 = vmatmul.f32.gmra.mxu0 %v1144
          %v1551 = vpop.f32.mrf.mxu0
          %v1552 = vadd.f32 %v1487, %v1551
          %1553 = vmatmul.f32.gmra.mxu0 %v1148
          %v1554 = vpop.f32.mrf.mxu0
          %v1555 = vadd.f32 %v1490, %v1554
          %1556 = vmatmul.f32.gmra.mxu0 %v1152
          %v1557 = vpop.f32.mrf.mxu0
          %v1558 = vadd.f32 %v1493, %v1557
          %1559 = vmatmul.f32.gmra.mxu0 %v1156
          %v1560 = vpop.f32.mrf.mxu0
          %v1561 = vadd.f32 %v1496, %v1560
          %1562 = vmatmul.f32.gmra.mxu0 %v1160
          %v1563 = vpop.f32.mrf.mxu0
          %v1564 = vadd.f32 %v1499, %v1563
          %1565 = vmatmul.f32.gmra.mxu0 %v1164
          %v1566 = vpop.f32.mrf.mxu0
          %v1567 = vadd.f32 %v1502, %v1566
          %1568 = vmatmul.f32.gmra.mxu0 %v1168
          %v1569 = vpop.f32.mrf.mxu0
          %v1570 = vadd.f32 %v1505, %v1569
          %1571 = vmatmul.f32.gmra.mxu0 %v1172
          %v1572 = vpop.f32.mrf.mxu0
          %v1573 = vadd.f32 %v1508, %v1572
          %1574 = vmatmul.f32.gmra.mxu0 %v1176
          %v1575 = vpop.f32.mrf.mxu0
          %v1576 = vadd.f32 %v1511, %v1575
          %1577 = vmatmul.f32.gmra.mxu0 %v1180
          %v1578 = vpop.f32.mrf.mxu0
          %v1579 = vadd.f32 %v1514, %v1578
          %1580 = vmatmul.f32.gmra.mxu0 %v1184
          %v1581 = vpop.f32.mrf.mxu0
          %v1582 = vadd.f32 %v1517, %v1581
          %1583 = vmatmul.f32.gmra.mxu0 %v1188
          %v1584 = vpop.f32.mrf.mxu0
          %v1585 = vadd.f32 %v1520, %v1584
          %1586 = vmatmul.f32.gmra.mxu0 %v1192
          %v1587 = vpop.f32.mrf.mxu0
          %v1588 = vadd.f32 %v1523, %v1587
          %1589 = vmatmul.f32.gmra.mxu0 %v1196
          %v1590 = vpop.f32.mrf.mxu0
          %v1591 = vadd.f32 %v1526, %v1590
          %1592 = vmatmul.f32.gmra.mxu0 %v1200
          %v1593 = vpop.f32.mrf.mxu0
          %v1594 = vadd.f32 %v1529, %v1593
          %1595 = vmatmul.f32.gmra.mxu0 %v1204
          %v1596 = vpop.f32.mrf.mxu0
          %v1597 = vadd.f32 %v1532, %v1596
          %1598 = vdwg.mxu0
          %1599 = vmatpush.msra.mxu0 %v1236
          %1600 = vmatpush.msra.mxu0 %v1234
          %1601 = vmatpush.msra.mxu0 %v1232
          %1602 = vmatpush.msra.mxu0 %v1230
          %1603 = vmatpush.msra.mxu0 %v1228
          %1604 = vmatpush.msra.mxu0 %v1226
          %1605 = vmatpush.msra.mxu0 %v1224
          %1606 = vmatpush.msra.mxu0 %v1222
          %1607 = vmatpush.msra.mxu0 %v1220
          %1608 = vmatpush.msra.mxu0 %v1218
          %1609 = vmatpush.msra.mxu0 %v1216
          %1610 = vmatpush.msra.mxu0 %v1214
          %1611 = vmatpush.msra.mxu0 %v1212
          %1612 = vmatpush.msra.mxu0 %v1210
          %1613 = vmatpush.msra.mxu0 %v1208
          %1614 = vmatpush.msra.mxu0 %v1206
          %1615 = vmatmul.f32.gmra.mxu0 %v1141
          %v1616 = vpop.f32.mrf.mxu0
          %v1617 = vadd.f32 %v1336, %v1616
          %1618 = vmatmul.f32.gmra.mxu0 %v1145
          %v1619 = vpop.f32.mrf.mxu0
          %v1620 = vadd.f32 %v1336, %v1619
          %1621 = vmatmul.f32.gmra.mxu0 %v1149
          %v1622 = vpop.f32.mrf.mxu0
          %v1623 = vadd.f32 %v1336, %v1622
          %1624 = vmatmul.f32.gmra.mxu0 %v1153
          %v1625 = vpop.f32.mrf.mxu0
          %v1626 = vadd.f32 %v1336, %v1625
          %1627 = vmatmul.f32.gmra.mxu0 %v1157
          %v1628 = vpop.f32.mrf.mxu0
          %v1629 = vadd.f32 %v1336, %v1628
          %1630 = vmatmul.f32.gmra.mxu0 %v1161
          %v1631 = vpop.f32.mrf.mxu0
          %v1632 = vadd.f32 %v1336, %v1631
          %1633 = vmatmul.f32.gmra.mxu0 %v1165
          %v1634 = vpop.f32.mrf.mxu0
          %v1635 = vadd.f32 %v1336, %v1634
          %1636 = vmatmul.f32.gmra.mxu0 %v1169
          %v1637 = vpop.f32.mrf.mxu0
          %v1638 = vadd.f32 %v1336, %v1637
          %1639 = vmatmul.f32.gmra.mxu0 %v1173
          %v1640 = vpop.f32.mrf.mxu0
          %v1641 = vadd.f32 %v1336, %v1640
          %1642 = vmatmul.f32.gmra.mxu0 %v1177
          %v1643 = vpop.f32.mrf.mxu0
          %v1644 = vadd.f32 %v1336, %v1643
          %1645 = vmatmul.f32.gmra.mxu0 %v1181
          %v1646 = vpop.f32.mrf.mxu0
          %v1647 = vadd.f32 %v1336, %v1646
          %1648 = vmatmul.f32.gmra.mxu0 %v1185
          %v1649 = vpop.f32.mrf.mxu0
          %v1650 = vadd.f32 %v1336, %v1649
          %1651 = vmatmul.f32.gmra.mxu0 %v1189
          %v1652 = vpop.f32.mrf.mxu0
          %v1653 = vadd.f32 %v1336, %v1652
          %1654 = vmatmul.f32.gmra.mxu0 %v1193
          %v1655 = vpop.f32.mrf.mxu0
          %v1656 = vadd.f32 %v1336, %v1655
          %1657 = vmatmul.f32.gmra.mxu0 %v1197
          %v1658 = vpop.f32.mrf.mxu0
          %v1659 = vadd.f32 %v1336, %v1658
          %1660 = vmatmul.f32.gmra.mxu0 %v1201
          %v1661 = vpop.f32.mrf.mxu0
          %v1662 = vadd.f32 %v1336, %v1661
          %1663 = vdwg.mxu0
          %1664 = vmatpush.msra.mxu0 %v1268
          %1665 = vmatpush.msra.mxu0 %v1266
          %1666 = vmatpush.msra.mxu0 %v1264
          %1667 = vmatpush.msra.mxu0 %v1262
          %1668 = vmatpush.msra.mxu0 %v1260
          %1669 = vmatpush.msra.mxu0 %v1258
          %1670 = vmatpush.msra.mxu0 %v1256
          %1671 = vmatpush.msra.mxu0 %v1254
          %1672 = vmatpush.msra.mxu0 %v1252
          %1673 = vmatpush.msra.mxu0 %v1250
          %1674 = vmatpush.msra.mxu0 %v1248
          %1675 = vmatpush.msra.mxu0 %v1246
          %1676 = vmatpush.msra.mxu0 %v1244
          %1677 = vmatpush.msra.mxu0 %v1242
          %1678 = vmatpush.msra.mxu0 %v1240
          %1679 = vmatpush.msra.mxu0 %v1238
          %1680 = vmatmul.f32.gmra.mxu0 %v1142
          %v1681 = vpop.f32.mrf.mxu0
          %v1682 = vadd.f32 %v1617, %v1681
          %1683 = vmatmul.f32.gmra.mxu0 %v1146
          %v1684 = vpop.f32.mrf.mxu0
          %v1685 = vadd.f32 %v1620, %v1684
          %1686 = vmatmul.f32.gmra.mxu0 %v1150
          %v1687 = vpop.f32.mrf.mxu0
          %v1688 = vadd.f32 %v1623, %v1687
          %1689 = vmatmul.f32.gmra.mxu0 %v1154
          %v1690 = vpop.f32.mrf.mxu0
          %v1691 = vadd.f32 %v1626, %v1690
          %1692 = vmatmul.f32.gmra.mxu0 %v1158
          %v1693 = vpop.f32.mrf.mxu0
          %v1694 = vadd.f32 %v1629, %v1693
          %1695 = vmatmul.f32.gmra.mxu0 %v1162
          %v1696 = vpop.f32.mrf.mxu0
          %v1697 = vadd.f32 %v1632, %v1696
          %1698 = vmatmul.f32.gmra.mxu0 %v1166
          %v1699 = vpop.f32.mrf.mxu0
          %v1700 = vadd.f32 %v1635, %v1699
          %1701 = vmatmul.f32.gmra.mxu0 %v1170
          %v1702 = vpop.f32.mrf.mxu0
          %v1703 = vadd.f32 %v1638, %v1702
          %1704 = vmatmul.f32.gmra.mxu0 %v1174
          %v1705 = vpop.f32.mrf.mxu0
          %v1706 = vadd.f32 %v1641, %v1705
          %1707 = vmatmul.f32.gmra.mxu0 %v1178
          %v1708 = vpop.f32.mrf.mxu0
          %v1709 = vadd.f32 %v1644, %v1708
          %1710 = vmatmul.f32.gmra.mxu0 %v1182
          %v1711 = vpop.f32.mrf.mxu0
          %v1712 = vadd.f32 %v1647, %v1711
          %1713 = vmatmul.f32.gmra.mxu0 %v1186
          %v1714 = vpop.f32.mrf.mxu0
          %v1715 = vadd.f32 %v1650, %v1714
          %1716 = vmatmul.f32.gmra.mxu0 %v1190
          %v1717 = vpop.f32.mrf.mxu0
          %v1718 = vadd.f32 %v1653, %v1717
          %1719 = vmatmul.f32.gmra.mxu0 %v1194
          %v1720 = vpop.f32.mrf.mxu0
          %v1721 = vadd.f32 %v1656, %v1720
          %1722 = vmatmul.f32.gmra.mxu0 %v1198
          %v1723 = vpop.f32.mrf.mxu0
          %v1724 = vadd.f32 %v1659, %v1723
          %1725 = vmatmul.f32.gmra.mxu0 %v1202
          %v1726 = vpop.f32.mrf.mxu0
          %v1727 = vadd.f32 %v1662, %v1726
          %1728 = vdwg.mxu0
          %1729 = vmatpush.msra.mxu0 %v1300
          %1730 = vmatpush.msra.mxu0 %v1298
          %1731 = vmatpush.msra.mxu0 %v1296
          %1732 = vmatpush.msra.mxu0 %v1294
          %1733 = vmatpush.msra.mxu0 %v1292
          %1734 = vmatpush.msra.mxu0 %v1290
          %1735 = vmatpush.msra.mxu0 %v1288
          %1736 = vmatpush.msra.mxu0 %v1286
          %1737 = vmatpush.msra.mxu0 %v1284
          %1738 = vmatpush.msra.mxu0 %v1282
          %1739 = vmatpush.msra.mxu0 %v1280
          %1740 = vmatpush.msra.mxu0 %v1278
          %1741 = vmatpush.msra.mxu0 %v1276
          %1742 = vmatpush.msra.mxu0 %v1274
          %1743 = vmatpush.msra.mxu0 %v1272
          %1744 = vmatpush.msra.mxu0 %v1270
          %1745 = vmatmul.f32.gmra.mxu0 %v1143
          %v1746 = vpop.f32.mrf.mxu0
          %v1747 = vadd.f32 %v1682, %v1746
          %1748 = vmatmul.f32.gmra.mxu0 %v1147
          %v1749 = vpop.f32.mrf.mxu0
          %v1750 = vadd.f32 %v1685, %v1749
          %1751 = vmatmul.f32.gmra.mxu0 %v1151
          %v1752 = vpop.f32.mrf.mxu0
          %v1753 = vadd.f32 %v1688, %v1752
          %1754 = vmatmul.f32.gmra.mxu0 %v1155
          %v1755 = vpop.f32.mrf.mxu0
          %v1756 = vadd.f32 %v1691, %v1755
          %1757 = vmatmul.f32.gmra.mxu0 %v1159
          %v1758 = vpop.f32.mrf.mxu0
          %v1759 = vadd.f32 %v1694, %v1758
          %1760 = vmatmul.f32.gmra.mxu0 %v1163
          %v1761 = vpop.f32.mrf.mxu0
          %v1762 = vadd.f32 %v1697, %v1761
          %1763 = vmatmul.f32.gmra.mxu0 %v1167
          %v1764 = vpop.f32.mrf.mxu0
          %v1765 = vadd.f32 %v1700, %v1764
          %1766 = vmatmul.f32.gmra.mxu0 %v1171
          %v1767 = vpop.f32.mrf.mxu0
          %v1768 = vadd.f32 %v1703, %v1767
          %1769 = vmatmul.f32.gmra.mxu0 %v1175
          %v1770 = vpop.f32.mrf.mxu0
          %v1771 = vadd.f32 %v1706, %v1770
          %1772 = vmatmul.f32.gmra.mxu0 %v1179
          %v1773 = vpop.f32.mrf.mxu0
          %v1774 = vadd.f32 %v1709, %v1773
          %1775 = vmatmul.f32.gmra.mxu0 %v1183
          %v1776 = vpop.f32.mrf.mxu0
          %v1777 = vadd.f32 %v1712, %v1776
          %1778 = vmatmul.f32.gmra.mxu0 %v1187
          %v1779 = vpop.f32.mrf.mxu0
          %v1780 = vadd.f32 %v1715, %v1779
          %1781 = vmatmul.f32.gmra.mxu0 %v1191
          %v1782 = vpop.f32.mrf.mxu0
          %v1783 = vadd.f32 %v1718, %v1782
          %1784 = vmatmul.f32.gmra.mxu0 %v1195
          %v1785 = vpop.f32.mrf.mxu0
          %v1786 = vadd.f32 %v1721, %v1785
          %1787 = vmatmul.f32.gmra.mxu0 %v1199
          %v1788 = vpop.f32.mrf.mxu0
          %v1789 = vadd.f32 %v1724, %v1788
          %1790 = vmatmul.f32.gmra.mxu0 %v1203
          %v1791 = vpop.f32.mrf.mxu0
          %v1792 = vadd.f32 %v1727, %v1791
          %1793 = vdwg.mxu0
          %1794 = vmatpush.msra.mxu0 %v1332
          %1795 = vmatpush.msra.mxu0 %v1330
          %1796 = vmatpush.msra.mxu0 %v1328
          %1797 = vmatpush.msra.mxu0 %v1326
          %1798 = vmatpush.msra.mxu0 %v1324
          %1799 = vmatpush.msra.mxu0 %v1322
          %1800 = vmatpush.msra.mxu0 %v1320
          %1801 = vmatpush.msra.mxu0 %v1318
          %1802 = vmatpush.msra.mxu0 %v1316
          %1803 = vmatpush.msra.mxu0 %v1314
          %1804 = vmatpush.msra.mxu0 %v1312
          %1805 = vmatpush.msra.mxu0 %v1310
          %1806 = vmatpush.msra.mxu0 %v1308
          %1807 = vmatpush.msra.mxu0 %v1306
          %1808 = vmatpush.msra.mxu0 %v1304
          %1809 = vmatpush.msra.mxu0 %v1302
          %1810 = vmatmul.f32.gmra.mxu0 %v1144
          %v1811 = vpop.f32.mrf.mxu0
          %v1812 = vadd.f32 %v1747, %v1811
          %1813 = vmatmul.f32.gmra.mxu0 %v1148
          %v1814 = vpop.f32.mrf.mxu0
          %v1815 = vadd.f32 %v1750, %v1814
          %1816 = vmatmul.f32.gmra.mxu0 %v1152
          %v1817 = vpop.f32.mrf.mxu0
          %v1818 = vadd.f32 %v1753, %v1817
          %1819 = vmatmul.f32.gmra.mxu0 %v1156
          %v1820 = vpop.f32.mrf.mxu0
          %v1821 = vadd.f32 %v1756, %v1820
          %1822 = vmatmul.f32.gmra.mxu0 %v1160
          %v1823 = vpop.f32.mrf.mxu0
          %v1824 = vadd.f32 %v1759, %v1823
          %1825 = vmatmul.f32.gmra.mxu0 %v1164
          %v1826 = vpop.f32.mrf.mxu0
          %v1827 = vadd.f32 %v1762, %v1826
          %1828 = vmatmul.f32.gmra.mxu0 %v1168
          %v1829 = vpop.f32.mrf.mxu0
          %v1830 = vadd.f32 %v1765, %v1829
          %1831 = vmatmul.f32.gmra.mxu0 %v1172
          %v1832 = vpop.f32.mrf.mxu0
          %v1833 = vadd.f32 %v1768, %v1832
          %1834 = vmatmul.f32.gmra.mxu0 %v1176
          %v1835 = vpop.f32.mrf.mxu0
          %v1836 = vadd.f32 %v1771, %v1835
          %1837 = vmatmul.f32.gmra.mxu0 %v1180
          %v1838 = vpop.f32.mrf.mxu0
          %v1839 = vadd.f32 %v1774, %v1838
          %1840 = vmatmul.f32.gmra.mxu0 %v1184
          %v1841 = vpop.f32.mrf.mxu0
          %v1842 = vadd.f32 %v1777, %v1841
          %1843 = vmatmul.f32.gmra.mxu0 %v1188
          %v1844 = vpop.f32.mrf.mxu0
          %v1845 = vadd.f32 %v1780, %v1844
          %1846 = vmatmul.f32.gmra.mxu0 %v1192
          %v1847 = vpop.f32.mrf.mxu0
          %v1848 = vadd.f32 %v1783, %v1847
          %1849 = vmatmul.f32.gmra.mxu0 %v1196
          %v1850 = vpop.f32.mrf.mxu0
          %v1851 = vadd.f32 %v1786, %v1850
          %1852 = vmatmul.f32.gmra.mxu0 %v1200
          %v1853 = vpop.f32.mrf.mxu0
          %v1854 = vadd.f32 %v1789, %v1853
          %1855 = vmatmul.f32.gmra.mxu0 %v1204
          %v1856 = vpop.f32.mrf.mxu0
          %v1857 = vadd.f32 %v1792, %v1856
          %1858 = vdwg.mxu0
          %v1859 = vtanh.pop %v1552
          %v1860 = vtanh.pop %v1812
          %v1861 = vtanh.pop %v1555
          %v1862 = vtanh.pop %v1815
          %v1863 = vtanh.pop %v1558
          %v1864 = vtanh.pop %v1818
          %v1865 = vtanh.pop %v1561
          %v1866 = vtanh.pop %v1821
          %v1867 = vtanh.pop %v1564
          %v1868 = vtanh.pop %v1824
          %v1869 = vtanh.pop %v1567
          %v1870 = vtanh.pop %v1827
          %v1871 = vtanh.pop %v1570
          %v1872 = vtanh.pop %v1830
          %v1873 = vtanh.pop %v1573
          %v1874 = vtanh.pop %v1833
          %v1875 = vtanh.pop %v1576
          %v1876 = vtanh.pop %v1836
          %v1877 = vtanh.pop %v1579
          %v1878 = vtanh.pop %v1839
          %v1879 = vtanh.pop %v1582
          %v1880 = vtanh.pop %v1842
          %v1881 = vtanh.pop %v1585
          %v1882 = vtanh.pop %v1845
          %v1883 = vtanh.pop %v1588
          %v1884 = vtanh.pop %v1848
          %v1885 = vtanh.pop %v1591
          %v1886 = vtanh.pop %v1851
          %v1887 = vtanh.pop %v1594
          %v1888 = vtanh.pop %v1854
          %v1889 = vtanh.pop %v1597
          %v1890 = vtanh.pop %v1857
          %v1891 = vld [vmem:[#allocation9] sm:$0xff]
          %v1892 = vld [vmem:[#allocation9 + $0x8] sm:$0xff]
          %v1893 = vld [vmem:[#allocation9 + $0x10] sm:$0xff]
          %v1894 = vld [vmem:[#allocation9 + $0x18] sm:$0xff]
          %v1895 = vld [vmem:[#allocation9 + $0x20] sm:$0xff]
          %v1896 = vld [vmem:[#allocation9 + $0x28] sm:$0xff]
          %v1897 = vld [vmem:[#allocation9 + $0x30] sm:$0xff]
          %v1898 = vld [vmem:[#allocation9 + $0x38] sm:$0xff]
          %v1899 = vld [vmem:[#allocation9 + $0x40] sm:$0xff]
          %v1900 = vld [vmem:[#allocation9 + $0x48] sm:$0xff]
          %v1901 = vld [vmem:[#allocation9 + $0x50] sm:$0xff]
          %v1902 = vld [vmem:[#allocation9 + $0x58] sm:$0xff]
          %v1903 = vld [vmem:[#allocation9 + $0x60] sm:$0xff]
          %v1904 = vld [vmem:[#allocation9 + $0x68] sm:$0xff]
          %v1905 = vld [vmem:[#allocation9 + $0x70] sm:$0xff]
          %v1906 = vld [vmem:[#allocation9 + $0x78] sm:$0xff]
          %v1907 = vld [vmem:[#allocation9 + $0x80] sm:$0xff]
          %v1908 = vld [vmem:[#allocation9 + $0x88] sm:$0xff]
          %v1909 = vld [vmem:[#allocation9 + $0x90] sm:$0xff]
          %v1910 = vld [vmem:[#allocation9 + $0x98] sm:$0xff]
          %v1911 = vld [vmem:[#allocation9 + $0xa0] sm:$0xff]
          %v1912 = vld [vmem:[#allocation9 + $0xa8] sm:$0xff]
          %v1913 = vld [vmem:[#allocation9 + $0xb0] sm:$0xff]
          %v1914 = vld [vmem:[#allocation9 + $0xb8] sm:$0xff]
          %v1915 = vld [vmem:[#allocation9 + $0xc0] sm:$0xff]
          %v1916 = vld [vmem:[#allocation9 + $0xc8] sm:$0xff]
          %v1917 = vld [vmem:[#allocation9 + $0xd0] sm:$0xff]
          %v1918 = vld [vmem:[#allocation9 + $0xd8] sm:$0xff]
          %v1919 = vld [vmem:[#allocation9 + $0xe0] sm:$0xff]
          %v1920 = vld [vmem:[#allocation9 + $0xe8] sm:$0xff]
          %v1921 = vld [vmem:[#allocation9 + $0xf0] sm:$0xff]
          %v1922 = vld [vmem:[#allocation9 + $0xf8] sm:$0xff]
          %v1923 = vld [vmem:[%s4] sm:$0x1]
          %v1925 = vperm.slane %v1923, 0
          %1927 = vmatpush.msra.mxu0 %v1906
          %1928 = vmatpush.msra.mxu0 %v1905
          %1929 = vmatpush.msra.mxu0 %v1904
          %1930 = vmatpush.msra.mxu0 %v1903
          %1931 = vmatpush.msra.mxu0 %v1902
          %1932 = vmatpush.msra.mxu0 %v1901
          %1933 = vmatpush.msra.mxu0 %v1900
          %1934 = vmatpush.msra.mxu0 %v1899
          %1935 = vmatpush.msra.mxu0 %v1898
          %1936 = vmatpush.msra.mxu0 %v1897
          %1937 = vmatpush.msra.mxu0 %v1896
          %1938 = vmatpush.msra.mxu0 %v1895
          %1939 = vmatpush.msra.mxu0 %v1894
          %1940 = vmatpush.msra.mxu0 %v1893
          %1941 = vmatpush.msra.mxu0 %v1892
          %1942 = vmatpush.msra.mxu0 %v1891
          %1943 = vmatmul.f32.gmra.mxu0 %v1859
          %v1944 = vpop.f32.mrf.mxu0
          %v1945 = vadd.f32 %v1925, %v1944
          %1946 = vmatmul.f32.gmra.mxu0 %v1861
          %v1947 = vpop.f32.mrf.mxu0
          %v1948 = vadd.f32 %v1925, %v1947
          %1949 = vmatmul.f32.gmra.mxu0 %v1863
          %v1950 = vpop.f32.mrf.mxu0
          %v1951 = vadd.f32 %v1925, %v1950
          %1952 = vmatmul.f32.gmra.mxu0 %v1865
          %v1953 = vpop.f32.mrf.mxu0
          %v1954 = vadd.f32 %v1925, %v1953
          %1955 = vmatmul.f32.gmra.mxu0 %v1867
          %v1956 = vpop.f32.mrf.mxu0
          %v1957 = vadd.f32 %v1925, %v1956
          %1958 = vmatmul.f32.gmra.mxu0 %v1869
          %v1959 = vpop.f32.mrf.mxu0
          %v1960 = vadd.f32 %v1925, %v1959
          %1961 = vmatmul.f32.gmra.mxu0 %v1871
          %v1962 = vpop.f32.mrf.mxu0
          %v1963 = vadd.f32 %v1925, %v1962
          %1964 = vmatmul.f32.gmra.mxu0 %v1873
          %v1965 = vpop.f32.mrf.mxu0
          %v1966 = vadd.f32 %v1925, %v1965
          %1967 = vmatmul.f32.gmra.mxu0 %v1875
          %v1968 = vpop.f32.mrf.mxu0
          %v1969 = vadd.f32 %v1925, %v1968
          %1970 = vmatmul.f32.gmra.mxu0 %v1877
          %v1971 = vpop.f32.mrf.mxu0
          %v1972 = vadd.f32 %v1925, %v1971
          %1973 = vmatmul.f32.gmra.mxu0 %v1879
          %v1974 = vpop.f32.mrf.mxu0
          %v1975 = vadd.f32 %v1925, %v1974
          %1976 = vmatmul.f32.gmra.mxu0 %v1881
          %v1977 = vpop.f32.mrf.mxu0
          %v1978 = vadd.f32 %v1925, %v1977
          %1979 = vmatmul.f32.gmra.mxu0 %v1883
          %v1980 = vpop.f32.mrf.mxu0
          %v1981 = vadd.f32 %v1925, %v1980
          %1982 = vmatmul.f32.gmra.mxu0 %v1885
          %v1983 = vpop.f32.mrf.mxu0
          %v1984 = vadd.f32 %v1925, %v1983
          %1985 = vmatmul.f32.gmra.mxu0 %v1887
          %v1986 = vpop.f32.mrf.mxu0
          %v1987 = vadd.f32 %v1925, %v1986
          %1988 = vmatmul.f32.gmra.mxu0 %v1889
          %v1989 = vpop.f32.mrf.mxu0
          %v1990 = vadd.f32 %v1925, %v1989
          %1991 = vdwg.mxu0
          %1992 = vmatpush.msra.mxu0 %v1922
          %1993 = vmatpush.msra.mxu0 %v1921
          %1994 = vmatpush.msra.mxu0 %v1920
          %1995 = vmatpush.msra.mxu0 %v1919
          %1996 = vmatpush.msra.mxu0 %v1918
          %1997 = vmatpush.msra.mxu0 %v1917
          %1998 = vmatpush.msra.mxu0 %v1916
          %1999 = vmatpush.msra.mxu0 %v1915
          %2000 = vmatpush.msra.mxu0 %v1914
          %2001 = vmatpush.msra.mxu0 %v1913
          %2002 = vmatpush.msra.mxu0 %v1912
          %2003 = vmatpush.msra.mxu0 %v1911
          %2004 = vmatpush.msra.mxu0 %v1910
          %2005 = vmatpush.msra.mxu0 %v1909
          %2006 = vmatpush.msra.mxu0 %v1908
          %2007 = vmatpush.msra.mxu0 %v1907
          %2008 = vmatmul.f32.gmra.mxu0 %v1860
          %v2009 = vpop.f32.mrf.mxu0
          %v2010 = vadd.f32 %v1945, %v2009
          %2011 = vmatmul.f32.gmra.mxu0 %v1862
          %v2012 = vpop.f32.mrf.mxu0
          %v2013 = vadd.f32 %v1948, %v2012
          %2014 = vmatmul.f32.gmra.mxu0 %v1864
          %v2015 = vpop.f32.mrf.mxu0
          %v2016 = vadd.f32 %v1951, %v2015
          %2017 = vmatmul.f32.gmra.mxu0 %v1866
          %v2018 = vpop.f32.mrf.mxu0
          %v2019 = vadd.f32 %v1954, %v2018
          %2020 = vmatmul.f32.gmra.mxu0 %v1868
          %v2021 = vpop.f32.mrf.mxu0
          %v2022 = vadd.f32 %v1957, %v2021
          %2023 = vmatmul.f32.gmra.mxu0 %v1870
          %v2024 = vpop.f32.mrf.mxu0
          %v2025 = vadd.f32 %v1960, %v2024
          %2026 = vmatmul.f32.gmra.mxu0 %v1872
          %v2027 = vpop.f32.mrf.mxu0
          %v2028 = vadd.f32 %v1963, %v2027
          %2029 = vmatmul.f32.gmra.mxu0 %v1874
          %v2030 = vpop.f32.mrf.mxu0
          %v2031 = vadd.f32 %v1966, %v2030
          %2032 = vmatmul.f32.gmra.mxu0 %v1876
          %v2033 = vpop.f32.mrf.mxu0
          %v2034 = vadd.f32 %v1969, %v2033
          %2035 = vmatmul.f32.gmra.mxu0 %v1878
          %v2036 = vpop.f32.mrf.mxu0
          %v2037 = vadd.f32 %v1972, %v2036
          %2038 = vmatmul.f32.gmra.mxu0 %v1880
          %v2039 = vpop.f32.mrf.mxu0
          %v2040 = vadd.f32 %v1975, %v2039
          %2041 = vmatmul.f32.gmra.mxu0 %v1882
          %v2042 = vpop.f32.mrf.mxu0
          %v2043 = vadd.f32 %v1978, %v2042
          %2044 = vmatmul.f32.gmra.mxu0 %v1884
          %v2045 = vpop.f32.mrf.mxu0
          %v2046 = vadd.f32 %v1981, %v2045
          %2047 = vmatmul.f32.gmra.mxu0 %v1886
          %v2048 = vpop.f32.mrf.mxu0
          %v2049 = vadd.f32 %v1984, %v2048
          %2050 = vmatmul.f32.gmra.mxu0 %v1888
          %v2051 = vpop.f32.mrf.mxu0
          %v2052 = vadd.f32 %v1987, %v2051
          %2053 = vmatmul.f32.gmra.mxu0 %v1890
          %v2054 = vpop.f32.mrf.mxu0
          %v2055 = vadd.f32 %v1990, %v2054
          %2056 = vdwg.mxu0
          %v2057 = vtanh.pop %v2010
          %v2058 = vtanh.pop %v2013
          %v2059 = vtanh.pop %v2016
          %v2060 = vtanh.pop %v2019
          %v2061 = vtanh.pop %v2022
          %v2062 = vtanh.pop %v2025
          %v2063 = vtanh.pop %v2028
          %v2064 = vtanh.pop %v2031
          %v2065 = vtanh.pop %v2034
          %v2066 = vtanh.pop %v2037
          %v2067 = vtanh.pop %v2040
          %v2068 = vtanh.pop %v2043
          %v2069 = vtanh.pop %v2046
          %v2070 = vtanh.pop %v2049
          %v2071 = vtanh.pop %v2052
          %v2072 = vtanh.pop %v2055
          %v2073 = vld [vmem:[#allocation11] sm:$0xff]
          %v2074 = vld [vmem:[#allocation11 + $0x8] sm:$0xff]
          %v2075 = vld [vmem:[#allocation11 + $0x10] sm:$0xff]
          %v2076 = vld [vmem:[#allocation11 + $0x18] sm:$0xff]
          %v2077 = vld [vmem:[#allocation11 + $0x20] sm:$0xff]
          %v2078 = vld [vmem:[#allocation11 + $0x28] sm:$0xff]
          %v2079 = vld [vmem:[#allocation11 + $0x30] sm:$0xff]
          %v2080 = vld [vmem:[#allocation11 + $0x38] sm:$0xff]
          %v2081 = vld [vmem:[#allocation11 + $0x40] sm:$0xff]
          %v2082 = vld [vmem:[#allocation11 + $0x48] sm:$0xff]
          %v2083 = vld [vmem:[#allocation11 + $0x50] sm:$0xff]
          %v2084 = vld [vmem:[#allocation11 + $0x58] sm:$0xff]
          %v2085 = vld [vmem:[#allocation11 + $0x60] sm:$0xff]
          %v2086 = vld [vmem:[#allocation11 + $0x68] sm:$0xff]
          %v2087 = vld [vmem:[#allocation11 + $0x70] sm:$0xff]
          %v2088 = vld [vmem:[#allocation11 + $0x78] sm:$0xff]
          %v2089 = vld [vmem:[#allocation11 + $0x80] sm:$0xff]
          %v2090 = vld [vmem:[#allocation11 + $0x88] sm:$0xff]
          %v2091 = vld [vmem:[#allocation11 + $0x90] sm:$0xff]
          %v2092 = vld [vmem:[#allocation11 + $0x98] sm:$0xff]
          %v2093 = vld [vmem:[#allocation11 + $0xa0] sm:$0xff]
          %v2094 = vld [vmem:[#allocation11 + $0xa8] sm:$0xff]
          %v2095 = vld [vmem:[#allocation11 + $0xb0] sm:$0xff]
          %v2096 = vld [vmem:[#allocation11 + $0xb8] sm:$0xff]
          %v2097 = vld [vmem:[#allocation11 + $0xc0] sm:$0xff]
          %v2098 = vld [vmem:[#allocation11 + $0xc8] sm:$0xff]
          %v2099 = vld [vmem:[#allocation11 + $0xd0] sm:$0xff]
          %v2100 = vld [vmem:[#allocation11 + $0xd8] sm:$0xff]
          %v2101 = vld [vmem:[#allocation11 + $0xe0] sm:$0xff]
          %v2102 = vld [vmem:[#allocation11 + $0xe8] sm:$0xff]
          %v2103 = vld [vmem:[#allocation11 + $0xf0] sm:$0xff]
          %v2104 = vld [vmem:[#allocation11 + $0xf8] sm:$0xff]
          %v2105 = vld [vmem:[%s6] sm:$0x3]
          %v2107 = vperm.slane %v2105, 0
          %v2108 = vperm.slane %v2105, 1
          %2111 = vmatpush.msra.mxu0 %v2103
          %2112 = vmatpush.msra.mxu0 %v2101
          %2113 = vmatpush.msra.mxu0 %v2099
          %2114 = vmatpush.msra.mxu0 %v2097
          %2115 = vmatpush.msra.mxu0 %v2095
          %2116 = vmatpush.msra.mxu0 %v2093
          %2117 = vmatpush.msra.mxu0 %v2091
          %2118 = vmatpush.msra.mxu0 %v2089
          %2119 = vmatpush.msra.mxu0 %v2087
          %2120 = vmatpush.msra.mxu0 %v2085
          %2121 = vmatpush.msra.mxu0 %v2083
          %2122 = vmatpush.msra.mxu0 %v2081
          %2123 = vmatpush.msra.mxu0 %v2079
          %2124 = vmatpush.msra.mxu0 %v2077
          %2125 = vmatpush.msra.mxu0 %v2075
          %2126 = vmatpush.msra.mxu0 %v2073
          %2127 = vmatmul.f32.gmra.mxu0 %v2057
          %v2128 = vpop.f32.mrf.mxu0
          %v2129 = vadd.f32 %v2107, %v2128
          %2130 = vmatmul.f32.gmra.mxu0 %v2058
          %v2131 = vpop.f32.mrf.mxu0
          %v2132 = vadd.f32 %v2107, %v2131
          %2133 = vmatmul.f32.gmra.mxu0 %v2059
          %v2134 = vpop.f32.mrf.mxu0
          %v2135 = vadd.f32 %v2107, %v2134
          %2136 = vmatmul.f32.gmra.mxu0 %v2060
          %v2137 = vpop.f32.mrf.mxu0
          %v2138 = vadd.f32 %v2107, %v2137
          %2139 = vmatmul.f32.gmra.mxu0 %v2061
          %v2140 = vpop.f32.mrf.mxu0
          %v2141 = vadd.f32 %v2107, %v2140
          %2142 = vmatmul.f32.gmra.mxu0 %v2062
          %v2143 = vpop.f32.mrf.mxu0
          %v2144 = vadd.f32 %v2107, %v2143
          %2145 = vmatmul.f32.gmra.mxu0 %v2063
          %v2146 = vpop.f32.mrf.mxu0
          %v2147 = vadd.f32 %v2107, %v2146
          %2148 = vmatmul.f32.gmra.mxu0 %v2064
          %v2149 = vpop.f32.mrf.mxu0
          %v2150 = vadd.f32 %v2107, %v2149
          %2151 = vmatmul.f32.gmra.mxu0 %v2065
          %v2152 = vpop.f32.mrf.mxu0
          %v2153 = vadd.f32 %v2107, %v2152
          %2154 = vmatmul.f32.gmra.mxu0 %v2066
          %v2155 = vpop.f32.mrf.mxu0
          %v2156 = vadd.f32 %v2107, %v2155
          %2157 = vmatmul.f32.gmra.mxu0 %v2067
          %v2158 = vpop.f32.mrf.mxu0
          %v2159 = vadd.f32 %v2107, %v2158
          %2160 = vmatmul.f32.gmra.mxu0 %v2068
          %v2161 = vpop.f32.mrf.mxu0
          %v2162 = vadd.f32 %v2107, %v2161
          %2163 = vmatmul.f32.gmra.mxu0 %v2069
          %v2164 = vpop.f32.mrf.mxu0
          %v2165 = vadd.f32 %v2107, %v2164
          %2166 = vmatmul.f32.gmra.mxu0 %v2070
          %v2167 = vpop.f32.mrf.mxu0
          %v2168 = vadd.f32 %v2107, %v2167
          %2169 = vmatmul.f32.gmra.mxu0 %v2071
          %v2170 = vpop.f32.mrf.mxu0
          %v2171 = vadd.f32 %v2107, %v2170
          %2172 = vmatmul.f32.gmra.mxu0 %v2072
          %v2173 = vpop.f32.mrf.mxu0
          %v2174 = vadd.f32 %v2107, %v2173
          %2175 = vdwg.mxu0
          %2176 = vmatpush.msra.mxu0 %v2104
          %2177 = vmatpush.msra.mxu0 %v2102
          %2178 = vmatpush.msra.mxu0 %v2100
          %2179 = vmatpush.msra.mxu0 %v2098
          %2180 = vmatpush.msra.mxu0 %v2096
          %2181 = vmatpush.msra.mxu0 %v2094
          %2182 = vmatpush.msra.mxu0 %v2092
          %2183 = vmatpush.msra.mxu0 %v2090
          %2184 = vmatpush.msra.mxu0 %v2088
          %2185 = vmatpush.msra.mxu0 %v2086
          %2186 = vmatpush.msra.mxu0 %v2084
          %2187 = vmatpush.msra.mxu0 %v2082
          %2188 = vmatpush.msra.mxu0 %v2080
          %2189 = vmatpush.msra.mxu0 %v2078
          %2190 = vmatpush.msra.mxu0 %v2076
          %2191 = vmatpush.msra.mxu0 %v2074
          %2192 = vmatmul.f32.gmra.mxu0 %v2057
          %v2193 = vpop.f32.mrf.mxu0
          %v2194 = vadd.f32 %v2108, %v2193
          %2195 = vmatmul.f32.gmra.mxu0 %v2058
          %v2196 = vpop.f32.mrf.mxu0
          %v2197 = vadd.f32 %v2108, %v2196
          %2198 = vmatmul.f32.gmra.mxu0 %v2059
          %v2199 = vpop.f32.mrf.mxu0
          %v2200 = vadd.f32 %v2108, %v2199
          %2201 = vmatmul.f32.gmra.mxu0 %v2060
          %v2202 = vpop.f32.mrf.mxu0
          %v2203 = vadd.f32 %v2108, %v2202
          %2204 = vmatmul.f32.gmra.mxu0 %v2061
          %v2205 = vpop.f32.mrf.mxu0
          %v2206 = vadd.f32 %v2108, %v2205
          %2207 = vmatmul.f32.gmra.mxu0 %v2062
          %v2208 = vpop.f32.mrf.mxu0
          %v2209 = vadd.f32 %v2108, %v2208
          %2210 = vmatmul.f32.gmra.mxu0 %v2063
          %v2211 = vpop.f32.mrf.mxu0
          %v2212 = vadd.f32 %v2108, %v2211
          %2213 = vmatmul.f32.gmra.mxu0 %v2064
          %v2214 = vpop.f32.mrf.mxu0
          %v2215 = vadd.f32 %v2108, %v2214
          %2216 = vmatmul.f32.gmra.mxu0 %v2065
          %v2217 = vpop.f32.mrf.mxu0
          %v2218 = vadd.f32 %v2108, %v2217
          %2219 = vmatmul.f32.gmra.mxu0 %v2066
          %v2220 = vpop.f32.mrf.mxu0
          %v2221 = vadd.f32 %v2108, %v2220
          %2222 = vmatmul.f32.gmra.mxu0 %v2067
          %v2223 = vpop.f32.mrf.mxu0
          %v2224 = vadd.f32 %v2108, %v2223
          %2225 = vmatmul.f32.gmra.mxu0 %v2068
          %v2226 = vpop.f32.mrf.mxu0
          %v2227 = vadd.f32 %v2108, %v2226
          %2228 = vmatmul.f32.gmra.mxu0 %v2069
          %v2229 = vpop.f32.mrf.mxu0
          %v2230 = vadd.f32 %v2108, %v2229
          %2231 = vmatmul.f32.gmra.mxu0 %v2070
          %v2232 = vpop.f32.mrf.mxu0
          %v2233 = vadd.f32 %v2108, %v2232
          %2234 = vmatmul.f32.gmra.mxu0 %v2071
          %v2235 = vpop.f32.mrf.mxu0
          %v2236 = vadd.f32 %v2108, %v2235
          %2237 = vmatmul.f32.gmra.mxu0 %v2072
          %v2238 = vpop.f32.mrf.mxu0
          %v2239 = vadd.f32 %v2108, %v2238
          %2240 = vdwg.mxu0
          %v2241 = vtanh.pop %v2129
          %v2242 = vtanh.pop %v2194
          %v2243 = vtanh.pop %v2132
          %v2244 = vtanh.pop %v2197
          %v2245 = vtanh.pop %v2135
          %v2246 = vtanh.pop %v2200
          %v2247 = vtanh.pop %v2138
          %v2248 = vtanh.pop %v2203
          %v2249 = vtanh.pop %v2141
          %v2250 = vtanh.pop %v2206
          %v2251 = vtanh.pop %v2144
          %v2252 = vtanh.pop %v2209
          %v2253 = vtanh.pop %v2147
          %v2254 = vtanh.pop %v2212
          %v2255 = vtanh.pop %v2150
          %v2256 = vtanh.pop %v2215
          %v2257 = vtanh.pop %v2153
          %v2258 = vtanh.pop %v2218
          %v2259 = vtanh.pop %v2156
          %v2260 = vtanh.pop %v2221
          %v2261 = vtanh.pop %v2159
          %v2262 = vtanh.pop %v2224
          %v2263 = vtanh.pop %v2162
          %v2264 = vtanh.pop %v2227
          %v2265 = vtanh.pop %v2165
          %v2266 = vtanh.pop %v2230
          %v2267 = vtanh.pop %v2168
          %v2268 = vtanh.pop %v2233
          %v2269 = vtanh.pop %v2171
          %v2270 = vtanh.pop %v2236
          %v2271 = vtanh.pop %v2174
          %v2272 = vtanh.pop %v2239
          %2273 = vst [vmem:[#allocation2] sm:$0xff] %v2241
          %2274 = vst [vmem:[#allocation2 + $0x8] sm:$0xff] %v2242
          %2275 = vst [vmem:[#allocation2 + $0x10] sm:$0xff] %v2243
          %2276 = vst [vmem:[#allocation2 + $0x18] sm:$0xff] %v2244
          %2277 = vst [vmem:[#allocation2 + $0x20] sm:$0xff] %v2245
          %2278 = vst [vmem:[#allocation2 + $0x28] sm:$0xff] %v2246
          %2279 = vst [vmem:[#allocation2 + $0x30] sm:$0xff] %v2247
          %2280 = vst [vmem:[#allocation2 + $0x38] sm:$0xff] %v2248
          %2281 = vst [vmem:[#allocation2 + $0x40] sm:$0xff] %v2249
          %2282 = vst [vmem:[#allocation2 + $0x48] sm:$0xff] %v2250
          %2283 = vst [vmem:[#allocation2 + $0x50] sm:$0xff] %v2251
          %2284 = vst [vmem:[#allocation2 + $0x58] sm:$0xff] %v2252
          %2285 = vst [vmem:[#allocation2 + $0x60] sm:$0xff] %v2253
          %2286 = vst [vmem:[#allocation2 + $0x68] sm:$0xff] %v2254
          %2287 = vst [vmem:[#allocation2 + $0x70] sm:$0xff] %v2255
          %2288 = vst [vmem:[#allocation2 + $0x78] sm:$0xff] %v2256
          %2289 = vst [vmem:[#allocation2 + $0x80] sm:$0xff] %v2257
          %2290 = vst [vmem:[#allocation2 + $0x88] sm:$0xff] %v2258
          %2291 = vst [vmem:[#allocation2 + $0x90] sm:$0xff] %v2259
          %2292 = vst [vmem:[#allocation2 + $0x98] sm:$0xff] %v2260
          %2293 = vst [vmem:[#allocation2 + $0xa0] sm:$0xff] %v2261
          %2294 = vst [vmem:[#allocation2 + $0xa8] sm:$0xff] %v2262
          %2295 = vst [vmem:[#allocation2 + $0xb0] sm:$0xff] %v2263
          %2296 = vst [vmem:[#allocation2 + $0xb8] sm:$0xff] %v2264
          %2297 = vst [vmem:[#allocation2 + $0xc0] sm:$0xff] %v2265
          %2298 = vst [vmem:[#allocation2 + $0xc8] sm:$0xff] %v2266
          %2299 = vst [vmem:[#allocation2 + $0xd0] sm:$0xff] %v2267
          %2300 = vst [vmem:[#allocation2 + $0xd8] sm:$0xff] %v2268
          %2301 = vst [vmem:[#allocation2 + $0xe0] sm:$0xff] %v2269
          %2302 = vst [vmem:[#allocation2 + $0xe8] sm:$0xff] %v2270
          %2303 = vst [vmem:[#allocation2 + $0xf0] sm:$0xff] %v2271
          %2304 = vst [vmem:[#allocation2 + $0xf8] sm:$0xff] %v2272
        $region84: #{tpu_custom_call.1} parent=55 // pred_fallthru
          _
        %v2305 = vld [vmem:[#allocation2] sm:$0xff]
        %v2306 = vld [vmem:[#allocation2 + $0x8] sm:$0xff]
        %v2307 = vld [vmem:[#allocation2 + $0x10] sm:$0xff]
        %v2308 = vld [vmem:[#allocation2 + $0x18] sm:$0xff]
        %v2309 = vld [vmem:[#allocation2 + $0x20] sm:$0xff]
        %v2310 = vld [vmem:[#allocation2 + $0x28] sm:$0xff]
        %v2311 = vld [vmem:[#allocation2 + $0x30] sm:$0xff]
        %v2312 = vld [vmem:[#allocation2 + $0x38] sm:$0xff]
        %v2313 = vld [vmem:[#allocation2 + $0x40] sm:$0xff]
        %v2314 = vld [vmem:[#allocation2 + $0x48] sm:$0xff]
        %v2315 = vld [vmem:[#allocation2 + $0x50] sm:$0xff]
        %v2316 = vld [vmem:[#allocation2 + $0x58] sm:$0xff]
        %v2317 = vld [vmem:[#allocation2 + $0x60] sm:$0xff]
        %v2318 = vld [vmem:[#allocation2 + $0x68] sm:$0xff]
        %v2319 = vld [vmem:[#allocation2 + $0x70] sm:$0xff]
        %v2320 = vld [vmem:[#allocation2 + $0x78] sm:$0xff]
        %v2321 = vld [vmem:[#allocation2 + $0x80] sm:$0xff]
        %v2322 = vld [vmem:[#allocation2 + $0x88] sm:$0xff]
        %v2323 = vld [vmem:[#allocation2 + $0x90] sm:$0xff]
        %v2324 = vld [vmem:[#allocation2 + $0x98] sm:$0xff]
        %v2325 = vld [vmem:[#allocation2 + $0xa0] sm:$0xff]
        %v2326 = vld [vmem:[#allocation2 + $0xa8] sm:$0xff]
        %v2327 = vld [vmem:[#allocation2 + $0xb0] sm:$0xff]
        %v2328 = vld [vmem:[#allocation2 + $0xb8] sm:$0xff]
        %v2329 = vld [vmem:[#allocation2 + $0xc0] sm:$0xff]
        %v2330 = vld [vmem:[#allocation2 + $0xc8] sm:$0xff]
        %v2331 = vld [vmem:[#allocation2 + $0xd0] sm:$0xff]
        %v2332 = vld [vmem:[#allocation2 + $0xd8] sm:$0xff]
        %v2333 = vld [vmem:[#allocation2 + $0xe0] sm:$0xff]
        %v2334 = vld [vmem:[#allocation2 + $0xe8] sm:$0xff]
        %v2335 = vld [vmem:[#allocation2 + $0xf0] sm:$0xff]
        %v2336 = vld [vmem:[#allocation2 + $0xf8] sm:$0xff]
        %v2337 = vld [vmem:[%s443] sm:$0xff]
        %v2338 = vld [vmem:[%s443 + $0x8] sm:$0xff]
        %v2339 = vld [vmem:[%s443 + $0x10] sm:$0xff]
        %v2340 = vld [vmem:[%s443 + $0x18] sm:$0xff]
        %v2341 = vld [vmem:[%s443 + $0x20] sm:$0xff]
        %v2342 = vld [vmem:[%s443 + $0x28] sm:$0xff]
        %v2343 = vld [vmem:[%s443 + $0x30] sm:$0xff]
        %v2344 = vld [vmem:[%s443 + $0x38] sm:$0xff]
        %v2345 = vld [vmem:[%s443 + $0x40] sm:$0xff]
        %v2346 = vld [vmem:[%s443 + $0x48] sm:$0xff]
        %v2347 = vld [vmem:[%s443 + $0x50] sm:$0xff]
        %v2348 = vld [vmem:[%s443 + $0x58] sm:$0xff]
        %v2349 = vld [vmem:[%s443 + $0x60] sm:$0xff]
        %v2350 = vld [vmem:[%s443 + $0x68] sm:$0xff]
        %v2351 = vld [vmem:[%s443 + $0x70] sm:$0xff]
        %v2352 = vld [vmem:[%s443 + $0x78] sm:$0xff]
        %v2353 = vld [vmem:[%s443 + $0x80] sm:$0xff]
        %v2354 = vld [vmem:[%s443 + $0x88] sm:$0xff]
        %v2355 = vld [vmem:[%s443 + $0x90] sm:$0xff]
        %v2356 = vld [vmem:[%s443 + $0x98] sm:$0xff]
        %v2357 = vld [vmem:[%s443 + $0xa0] sm:$0xff]
        %v2358 = vld [vmem:[%s443 + $0xa8] sm:$0xff]
        %v2359 = vld [vmem:[%s443 + $0xb0] sm:$0xff]
        %v2360 = vld [vmem:[%s443 + $0xb8] sm:$0xff]
        %v2361 = vld [vmem:[%s443 + $0xc0] sm:$0xff]
        %v2362 = vld [vmem:[%s443 + $0xc8] sm:$0xff]
        %v2363 = vld [vmem:[%s443 + $0xd0] sm:$0xff]
        %v2364 = vld [vmem:[%s443 + $0xd8] sm:$0xff]
        %v2365 = vld [vmem:[%s443 + $0xe0] sm:$0xff]
        %v2366 = vld [vmem:[%s443 + $0xe8] sm:$0xff]
        %v2367 = vld [vmem:[%s443 + $0xf0] sm:$0xff]
        %v2368 = vld [vmem:[%s443 + $0xf8] sm:$0xff]
        %v2369 = vld [vmem:[%s443 + $0x100] sm:$0xff]
        %v2370 = vld [vmem:[%s443 + $0x108] sm:$0xff]
        %v2371 = vld [vmem:[%s443 + $0x110] sm:$0xff]
        %v2372 = vld [vmem:[%s443 + $0x118] sm:$0xff]
        %v2373 = vld [vmem:[%s443 + $0x120] sm:$0xff]
        %v2374 = vld [vmem:[%s443 + $0x128] sm:$0xff]
        %v2375 = vld [vmem:[%s443 + $0x130] sm:$0xff]
        %v2376 = vld [vmem:[%s443 + $0x138] sm:$0xff]
        %v2377 = vld [vmem:[%s443 + $0x140] sm:$0xff]
        %v2378 = vld [vmem:[%s443 + $0x148] sm:$0xff]
        %v2379 = vld [vmem:[%s443 + $0x150] sm:$0xff]
        %v2380 = vld [vmem:[%s443 + $0x158] sm:$0xff]
        %v2381 = vld [vmem:[%s443 + $0x160] sm:$0xff]
        %v2382 = vld [vmem:[%s443 + $0x168] sm:$0xff]
        %v2383 = vld [vmem:[%s443 + $0x170] sm:$0xff]
        %v2384 = vld [vmem:[%s443 + $0x178] sm:$0xff]
        %v2385 = vld [vmem:[%s443 + $0x180] sm:$0xff]
        %v2386 = vld [vmem:[%s443 + $0x188] sm:$0xff]
        %v2387 = vld [vmem:[%s443 + $0x190] sm:$0xff]
        %v2388 = vld [vmem:[%s443 + $0x198] sm:$0xff]
        %v2389 = vld [vmem:[%s443 + $0x1a0] sm:$0xff]
        %v2390 = vld [vmem:[%s443 + $0x1a8] sm:$0xff]
        %v2391 = vld [vmem:[%s443 + $0x1b0] sm:$0xff]
        %v2392 = vld [vmem:[%s443 + $0x1b8] sm:$0xff]
        %v2393 = vld [vmem:[%s443 + $0x1c0] sm:$0xff]
        %v2394 = vld [vmem:[%s443 + $0x1c8] sm:$0xff]
        %v2395 = vld [vmem:[%s443 + $0x1d0] sm:$0xff]
        %v2396 = vld [vmem:[%s443 + $0x1d8] sm:$0xff]
        %v2397 = vld [vmem:[%s443 + $0x1e0] sm:$0xff]
        %v2398 = vld [vmem:[%s443 + $0x1e8] sm:$0xff]
        %v2399 = vld [vmem:[%s443 + $0x1f0] sm:$0xff]
        %v2400 = vld [vmem:[%s443 + $0x1f8] sm:$0xff]
        %v2401 = vld [vmem:[%s493] sm:$0x3]
        %v2403 = vperm.slane %v2401, 0
        %v2404 = vperm.slane %v2401, 1
        %2407 = vmatpush.msra.mxu0 %v2367
        %2408 = vmatpush.msra.mxu0 %v2365
        %2409 = vmatpush.msra.mxu0 %v2363
        %2410 = vmatpush.msra.mxu0 %v2361
        %2411 = vmatpush.msra.mxu0 %v2359
        %2412 = vmatpush.msra.mxu0 %v2357
        %2413 = vmatpush.msra.mxu0 %v2355
        %2414 = vmatpush.msra.mxu0 %v2353
        %2415 = vmatpush.msra.mxu0 %v2351
        %2416 = vmatpush.msra.mxu0 %v2349
        %2417 = vmatpush.msra.mxu0 %v2347
        %2418 = vmatpush.msra.mxu0 %v2345
        %2419 = vmatpush.msra.mxu0 %v2343
        %2420 = vmatpush.msra.mxu0 %v2341
        %2421 = vmatpush.msra.mxu0 %v2339
        %2422 = vmatpush.msra.mxu0 %v2337
        %2423 = vmatmul.f32.gmra.mxu0 %v2305
        %v2424 = vpop.f32.mrf.mxu0
        %v2425 = vadd.f32 %v2403, %v2424
        %2426 = vmatmul.f32.gmra.mxu0 %v2307
        %v2427 = vpop.f32.mrf.mxu0
        %v2428 = vadd.f32 %v2403, %v2427
        %2429 = vmatmul.f32.gmra.mxu0 %v2309
        %v2430 = vpop.f32.mrf.mxu0
        %v2431 = vadd.f32 %v2403, %v2430
        %2432 = vmatmul.f32.gmra.mxu0 %v2311
        %v2433 = vpop.f32.mrf.mxu0
        %v2434 = vadd.f32 %v2403, %v2433
        %2435 = vmatmul.f32.gmra.mxu0 %v2313
        %v2436 = vpop.f32.mrf.mxu0
        %v2437 = vadd.f32 %v2403, %v2436
        %2438 = vmatmul.f32.gmra.mxu0 %v2315
        %v2439 = vpop.f32.mrf.mxu0
        %v2440 = vadd.f32 %v2403, %v2439
        %2441 = vmatmul.f32.gmra.mxu0 %v2317
        %v2442 = vpop.f32.mrf.mxu0
        %v2443 = vadd.f32 %v2403, %v2442
        %2444 = vmatmul.f32.gmra.mxu0 %v2319
        %v2445 = vpop.f32.mrf.mxu0
        %v2446 = vadd.f32 %v2403, %v2445
        %2447 = vmatmul.f32.gmra.mxu0 %v2321
        %v2448 = vpop.f32.mrf.mxu0
        %v2449 = vadd.f32 %v2403, %v2448
        %2450 = vmatmul.f32.gmra.mxu0 %v2323
        %v2451 = vpop.f32.mrf.mxu0
        %v2452 = vadd.f32 %v2403, %v2451
        %2453 = vmatmul.f32.gmra.mxu0 %v2325
        %v2454 = vpop.f32.mrf.mxu0
        %v2455 = vadd.f32 %v2403, %v2454
        %2456 = vmatmul.f32.gmra.mxu0 %v2327
        %v2457 = vpop.f32.mrf.mxu0
        %v2458 = vadd.f32 %v2403, %v2457
        %2459 = vmatmul.f32.gmra.mxu0 %v2329
        %v2460 = vpop.f32.mrf.mxu0
        %v2461 = vadd.f32 %v2403, %v2460
        %2462 = vmatmul.f32.gmra.mxu0 %v2331
        %v2463 = vpop.f32.mrf.mxu0
        %v2464 = vadd.f32 %v2403, %v2463
        %2465 = vmatmul.f32.gmra.mxu0 %v2333
        %v2466 = vpop.f32.mrf.mxu0
        %v2467 = vadd.f32 %v2403, %v2466
        %2468 = vmatmul.f32.gmra.mxu0 %v2335
        %v2469 = vpop.f32.mrf.mxu0
        %v2470 = vadd.f32 %v2403, %v2469
        %2471 = vdwg.mxu0
        %2472 = vmatpush.msra.mxu0 %v2399
        %2473 = vmatpush.msra.mxu0 %v2397
        %2474 = vmatpush.msra.mxu0 %v2395
        %2475 = vmatpush.msra.mxu0 %v2393
        %2476 = vmatpush.msra.mxu0 %v2391
        %2477 = vmatpush.msra.mxu0 %v2389
        %2478 = vmatpush.msra.mxu0 %v2387
        %2479 = vmatpush.msra.mxu0 %v2385
        %2480 = vmatpush.msra.mxu0 %v2383
        %2481 = vmatpush.msra.mxu0 %v2381
        %2482 = vmatpush.msra.mxu0 %v2379
        %2483 = vmatpush.msra.mxu0 %v2377
        %2484 = vmatpush.msra.mxu0 %v2375
        %2485 = vmatpush.msra.mxu0 %v2373
        %2486 = vmatpush.msra.mxu0 %v2371
        %2487 = vmatpush.msra.mxu0 %v2369
        %2488 = vmatmul.f32.gmra.mxu0 %v2306
        %v2489 = vpop.f32.mrf.mxu0
        %v2490 = vadd.f32 %v2425, %v2489
        %2491 = vmatmul.f32.gmra.mxu0 %v2308
        %v2492 = vpop.f32.mrf.mxu0
        %v2493 = vadd.f32 %v2428, %v2492
        %2494 = vmatmul.f32.gmra.mxu0 %v2310
        %v2495 = vpop.f32.mrf.mxu0
        %v2496 = vadd.f32 %v2431, %v2495
        %2497 = vmatmul.f32.gmra.mxu0 %v2312
        %v2498 = vpop.f32.mrf.mxu0
        %v2499 = vadd.f32 %v2434, %v2498
        %2500 = vmatmul.f32.gmra.mxu0 %v2314
        %v2501 = vpop.f32.mrf.mxu0
        %v2502 = vadd.f32 %v2437, %v2501
        %2503 = vmatmul.f32.gmra.mxu0 %v2316
        %v2504 = vpop.f32.mrf.mxu0
        %v2505 = vadd.f32 %v2440, %v2504
        %2506 = vmatmul.f32.gmra.mxu0 %v2318
        %v2507 = vpop.f32.mrf.mxu0
        %v2508 = vadd.f32 %v2443, %v2507
        %2509 = vmatmul.f32.gmra.mxu0 %v2320
        %v2510 = vpop.f32.mrf.mxu0
        %v2511 = vadd.f32 %v2446, %v2510
        %2512 = vmatmul.f32.gmra.mxu0 %v2322
        %v2513 = vpop.f32.mrf.mxu0
        %v2514 = vadd.f32 %v2449, %v2513
        %2515 = vmatmul.f32.gmra.mxu0 %v2324
        %v2516 = vpop.f32.mrf.mxu0
        %v2517 = vadd.f32 %v2452, %v2516
        %2518 = vmatmul.f32.gmra.mxu0 %v2326
        %v2519 = vpop.f32.mrf.mxu0
        %v2520 = vadd.f32 %v2455, %v2519
        %2521 = vmatmul.f32.gmra.mxu0 %v2328
        %v2522 = vpop.f32.mrf.mxu0
        %v2523 = vadd.f32 %v2458, %v2522
        %2524 = vmatmul.f32.gmra.mxu0 %v2330
        %v2525 = vpop.f32.mrf.mxu0
        %v2526 = vadd.f32 %v2461, %v2525
        %2527 = vmatmul.f32.gmra.mxu0 %v2332
        %v2528 = vpop.f32.mrf.mxu0
        %v2529 = vadd.f32 %v2464, %v2528
        %2530 = vmatmul.f32.gmra.mxu0 %v2334
        %v2531 = vpop.f32.mrf.mxu0
        %v2532 = vadd.f32 %v2467, %v2531
        %2533 = vmatmul.f32.gmra.mxu0 %v2336
        %v2534 = vpop.f32.mrf.mxu0
        %v2535 = vadd.f32 %v2470, %v2534
        %2536 = vdwg.mxu0
        %2537 = vmatpush.msra.mxu0 %v2368
        %2538 = vmatpush.msra.mxu0 %v2366
        %2539 = vmatpush.msra.mxu0 %v2364
        %2540 = vmatpush.msra.mxu0 %v2362
        %2541 = vmatpush.msra.mxu0 %v2360
        %2542 = vmatpush.msra.mxu0 %v2358
        %2543 = vmatpush.msra.mxu0 %v2356
        %2544 = vmatpush.msra.mxu0 %v2354
        %2545 = vmatpush.msra.mxu0 %v2352
        %2546 = vmatpush.msra.mxu0 %v2350
        %2547 = vmatpush.msra.mxu0 %v2348
        %2548 = vmatpush.msra.mxu0 %v2346
        %2549 = vmatpush.msra.mxu0 %v2344
        %2550 = vmatpush.msra.mxu0 %v2342
        %2551 = vmatpush.msra.mxu0 %v2340
        %2552 = vmatpush.msra.mxu0 %v2338
        %2553 = vmatmul.f32.gmra.mxu0 %v2305
        %v2554 = vpop.f32.mrf.mxu0
        %v2555 = vadd.f32 %v2404, %v2554
        %2556 = vmatmul.f32.gmra.mxu0 %v2307
        %v2557 = vpop.f32.mrf.mxu0
        %v2558 = vadd.f32 %v2404, %v2557
        %2559 = vmatmul.f32.gmra.mxu0 %v2309
        %v2560 = vpop.f32.mrf.mxu0
        %v2561 = vadd.f32 %v2404, %v2560
        %2562 = vmatmul.f32.gmra.mxu0 %v2311
        %v2563 = vpop.f32.mrf.mxu0
        %v2564 = vadd.f32 %v2404, %v2563
        %2565 = vmatmul.f32.gmra.mxu0 %v2313
        %v2566 = vpop.f32.mrf.mxu0
        %v2567 = vadd.f32 %v2404, %v2566
        %2568 = vmatmul.f32.gmra.mxu0 %v2315
        %v2569 = vpop.f32.mrf.mxu0
        %v2570 = vadd.f32 %v2404, %v2569
        %2571 = vmatmul.f32.gmra.mxu0 %v2317
        %v2572 = vpop.f32.mrf.mxu0
        %v2573 = vadd.f32 %v2404, %v2572
        %2574 = vmatmul.f32.gmra.mxu0 %v2319
        %v2575 = vpop.f32.mrf.mxu0
        %v2576 = vadd.f32 %v2404, %v2575
        %2577 = vmatmul.f32.gmra.mxu0 %v2321
        %v2578 = vpop.f32.mrf.mxu0
        %v2579 = vadd.f32 %v2404, %v2578
        %2580 = vmatmul.f32.gmra.mxu0 %v2323
        %v2581 = vpop.f32.mrf.mxu0
        %v2582 = vadd.f32 %v2404, %v2581
        %2583 = vmatmul.f32.gmra.mxu0 %v2325
        %v2584 = vpop.f32.mrf.mxu0
        %v2585 = vadd.f32 %v2404, %v2584
        %2586 = vmatmul.f32.gmra.mxu0 %v2327
        %v2587 = vpop.f32.mrf.mxu0
        %v2588 = vadd.f32 %v2404, %v2587
        %2589 = vmatmul.f32.gmra.mxu0 %v2329
        %v2590 = vpop.f32.mrf.mxu0
        %v2591 = vadd.f32 %v2404, %v2590
        %2592 = vmatmul.f32.gmra.mxu0 %v2331
        %v2593 = vpop.f32.mrf.mxu0
        %v2594 = vadd.f32 %v2404, %v2593
        %2595 = vmatmul.f32.gmra.mxu0 %v2333
        %v2596 = vpop.f32.mrf.mxu0
        %v2597 = vadd.f32 %v2404, %v2596
        %2598 = vmatmul.f32.gmra.mxu0 %v2335
        %v2599 = vpop.f32.mrf.mxu0
        %v2600 = vadd.f32 %v2404, %v2599
        %2601 = vdwg.mxu0
        %2602 = vmatpush.msra.mxu0 %v2400
        %2603 = vmatpush.msra.mxu0 %v2398
        %2604 = vmatpush.msra.mxu0 %v2396
        %2605 = vmatpush.msra.mxu0 %v2394
        %2606 = vmatpush.msra.mxu0 %v2392
        %2607 = vmatpush.msra.mxu0 %v2390
        %2608 = vmatpush.msra.mxu0 %v2388
        %2609 = vmatpush.msra.mxu0 %v2386
        %2610 = vmatpush.msra.mxu0 %v2384
        %2611 = vmatpush.msra.mxu0 %v2382
        %2612 = vmatpush.msra.mxu0 %v2380
        %2613 = vmatpush.msra.mxu0 %v2378
        %2614 = vmatpush.msra.mxu0 %v2376
        %2615 = vmatpush.msra.mxu0 %v2374
        %2616 = vmatpush.msra.mxu0 %v2372
        %2617 = vmatpush.msra.mxu0 %v2370
        %2618 = vmatmul.f32.gmra.mxu0 %v2306
        %v2619 = vpop.f32.mrf.mxu0
        %v2620 = vadd.f32 %v2555, %v2619
        %2621 = vmatmul.f32.gmra.mxu0 %v2308
        %v2622 = vpop.f32.mrf.mxu0
        %v2623 = vadd.f32 %v2558, %v2622
        %2624 = vmatmul.f32.gmra.mxu0 %v2310
        %v2625 = vpop.f32.mrf.mxu0
        %v2626 = vadd.f32 %v2561, %v2625
        %2627 = vmatmul.f32.gmra.mxu0 %v2312
        %v2628 = vpop.f32.mrf.mxu0
        %v2629 = vadd.f32 %v2564, %v2628
        %2630 = vmatmul.f32.gmra.mxu0 %v2314
        %v2631 = vpop.f32.mrf.mxu0
        %v2632 = vadd.f32 %v2567, %v2631
        %2633 = vmatmul.f32.gmra.mxu0 %v2316
        %v2634 = vpop.f32.mrf.mxu0
        %v2635 = vadd.f32 %v2570, %v2634
        %2636 = vmatmul.f32.gmra.mxu0 %v2318
        %v2637 = vpop.f32.mrf.mxu0
        %v2638 = vadd.f32 %v2573, %v2637
        %2639 = vmatmul.f32.gmra.mxu0 %v2320
        %v2640 = vpop.f32.mrf.mxu0
        %v2641 = vadd.f32 %v2576, %v2640
        %2642 = vmatmul.f32.gmra.mxu0 %v2322
        %v2643 = vpop.f32.mrf.mxu0
        %v2644 = vadd.f32 %v2579, %v2643
        %2645 = vmatmul.f32.gmra.mxu0 %v2324
        %v2646 = vpop.f32.mrf.mxu0
        %v2647 = vadd.f32 %v2582, %v2646
        %2648 = vmatmul.f32.gmra.mxu0 %v2326
        %v2649 = vpop.f32.mrf.mxu0
        %v2650 = vadd.f32 %v2585, %v2649
        %2651 = vmatmul.f32.gmra.mxu0 %v2328
        %v2652 = vpop.f32.mrf.mxu0
        %v2653 = vadd.f32 %v2588, %v2652
        %2654 = vmatmul.f32.gmra.mxu0 %v2330
        %v2655 = vpop.f32.mrf.mxu0
        %v2656 = vadd.f32 %v2591, %v2655
        %2657 = vmatmul.f32.gmra.mxu0 %v2332
        %v2658 = vpop.f32.mrf.mxu0
        %v2659 = vadd.f32 %v2594, %v2658
        %2660 = vmatmul.f32.gmra.mxu0 %v2334
        %v2661 = vpop.f32.mrf.mxu0
        %v2662 = vadd.f32 %v2597, %v2661
        %2663 = vmatmul.f32.gmra.mxu0 %v2336
        %v2664 = vpop.f32.mrf.mxu0
        %v2665 = vadd.f32 %v2600, %v2664
        %2666 = vdwg.mxu0
        %2667 = vst [vmem:[%s487] sm:$0xff] %v2490
        %2668 = vst [vmem:[%s487 + $0x8] sm:$0xff] %v2620
        %2669 = vst [vmem:[%s487 + $0x10] sm:$0xff] %v2493
        %2670 = vst [vmem:[%s487 + $0x18] sm:$0xff] %v2623
        %2671 = vst [vmem:[%s487 + $0x20] sm:$0xff] %v2496
        %2672 = vst [vmem:[%s487 + $0x28] sm:$0xff] %v2626
        %2673 = vst [vmem:[%s487 + $0x30] sm:$0xff] %v2499
        %2674 = vst [vmem:[%s487 + $0x38] sm:$0xff] %v2629
        %2675 = vst [vmem:[%s487 + $0x40] sm:$0xff] %v2502
        %2676 = vst [vmem:[%s487 + $0x48] sm:$0xff] %v2632
        %2677 = vst [vmem:[%s487 + $0x50] sm:$0xff] %v2505
        %2678 = vst [vmem:[%s487 + $0x58] sm:$0xff] %v2635
        %2679 = vst [vmem:[%s487 + $0x60] sm:$0xff] %v2508
        %2680 = vst [vmem:[%s487 + $0x68] sm:$0xff] %v2638
        %2681 = vst [vmem:[%s487 + $0x70] sm:$0xff] %v2511
        %2682 = vst [vmem:[%s487 + $0x78] sm:$0xff] %v2641
        %2683 = vst [vmem:[%s487 + $0x80] sm:$0xff] %v2514
        %2684 = vst [vmem:[%s487 + $0x88] sm:$0xff] %v2644
        %2685 = vst [vmem:[%s487 + $0x90] sm:$0xff] %v2517
        %2686 = vst [vmem:[%s487 + $0x98] sm:$0xff] %v2647
        %2687 = vst [vmem:[%s487 + $0xa0] sm:$0xff] %v2520
        %2688 = vst [vmem:[%s487 + $0xa8] sm:$0xff] %v2650
        %2689 = vst [vmem:[%s487 + $0xb0] sm:$0xff] %v2523
        %2690 = vst [vmem:[%s487 + $0xb8] sm:$0xff] %v2653
        %2691 = vst [vmem:[%s487 + $0xc0] sm:$0xff] %v2526
        %2692 = vst [vmem:[%s487 + $0xc8] sm:$0xff] %v2656
        %2693 = vst [vmem:[%s487 + $0xd0] sm:$0xff] %v2529
        %2694 = vst [vmem:[%s487 + $0xd8] sm:$0xff] %v2659
        %2695 = vst [vmem:[%s487 + $0xe0] sm:$0xff] %v2532
        %2696 = vst [vmem:[%s487 + $0xe8] sm:$0xff] %v2662
        %2697 = vst [vmem:[%s487 + $0xf0] sm:$0xff] %v2535
        %2698 = vst [vmem:[%s487 + $0xf8] sm:$0xff] %v2665
        %s2699 = sand.u32 %s257, 1
        %s2700 = scalar_lea.sflag [#allocation5], %s2699
        %s2701 = sand.u32 %s257, 1
        %s2702 = smul.addr %s2701, 256
        %s2703 = scalar_lea.vmem [#allocation14], %s2702
        // Predicated region
        $region85: #{tpu_custom_call.1} parent=55 // pred_check
          %p2704 = pneg %p267
        $region86: #{tpu_custom_call.1} parent=55 // pred_check_branch
          %2706 = sbr.rel (%p2704) target = $region88
        $region87: #{tpu_custom_call.1} parent=55 // pred_region
          %s2707 = smul.u32 16, %s35
          %s2708 = smul.u32 2, %s36
          %2710 = vsyncadd %s2700, 0
          %s2711 = smul.addr %s2707, 4
          %s2712 = sadd.s32 %s2708, %s2711
          %s2713 = smul.addr %s2712, 8
          %s2714 = scalar_lea.hbm %s9, %s2713
          %s2715 = sshll.u32 %s2703, 4
          %s2716 = int_to_ptr.vmem [resolvable:$true] %s2715
          %s2717 = sshll.u32 %s2714, 4
          %s2718 = int_to_ptr.hbm [resolvable:$true] %s2717
          %2723 = dma.vmem_to_hbm [thread:$0]  %s2716, 4096, %s2718, %s2700, 256, 512, 16
        $region88: #{tpu_custom_call.1} parent=55 // pred_fallthru
          _
      $region56: #{tpu_custom_call.1} parent=5 // pred_fallthru
        _
      %p2724 = scmp.le.s32.totalorder 2, %s26
      // Predicated region
      $region89: #{tpu_custom_call.1} parent=5 // pred_check
        %p2725 = pneg %p2724
      $region90: #{tpu_custom_call.1} parent=5 // pred_check_branch
        %2727 = sbr.rel (%p2725) target = $region92
      $region91: #{tpu_custom_call.1} parent=5 // pred_region
        %s2728 = ssub.s32 %s26, 2
        // Predicated region
        $region93: #{tpu_custom_call.1} parent=91 // pred_check
          %p2729 = pneg %p273
        $region94: #{tpu_custom_call.1} parent=91 // pred_check_branch
          %2731 = sbr.rel (%p2729) target = $region96
        $region95: #{tpu_custom_call.1} parent=91 // pred_region
          %s2732 = sand.u32 %s258, 1
          %s2733 = scalar_lea.sflag [#allocation5], %s2732
          %s2734 = sand.u32 %s258, 1
          %s2735 = smul.addr %s2734, 256
          %s2736 = scalar_lea.vmem [#allocation14], %s2735
          %2738 = dma.done %s2733, 4096
        $region96: #{tpu_custom_call.1} parent=91 // pred_fallthru
          _
      $region92: #{tpu_custom_call.1} parent=5 // pred_fallthru
        _
    $region6: #{tpu_custom_call.1} parent=1 // loop_footer
      %s30 = sadd.s32 1, %s26
    $region7: #{tpu_custom_call.1} parent=1 // loop_footer_branch
      %25 = sbr.rel target = $region3
    $region8: #{tpu_custom_call.1} parent=1 // loop_exit
      _
    %2739 = vsyncpa [#allocation4], 1
    %s2740 = scalar_lea.sflag [#allocation4], 1
    %2741 = vsyncpa %s2740, 1
    %2742 = vsyncpa [#allocation7], 1
    %2743 = vsyncpa [#allocation10], 1
    %2744 = vsyncpa [#allocation13], 1
    %s2745 = scalar_lea.sflag [#allocation13], 1
    %2746 = vsyncpa %s2745, 1
    %2747 = vsyncpa [#allocation5], 1
    %s2748 = scalar_lea.sflag [#allocation5], 1
    %2749 = vsyncpa %s2748, 1

</llo_original>
